<compile_context>
chip_gen: v6e
topology: v6e:2x2x1
jax: 0.10.0
libtpu: 0.0.40
codegen_flags: <defaults>
</compile_context>

<pallas_src>
import functools
import math

import jax
import jax.numpy as jnp
from jax.experimental import pallas as pl
from jax.experimental.pallas import tpu as pltpu


def _sdpa_kernel(q_ref, k_ref, v_ref, m_ref, attn_ref, out_ref, *, scale):
    # Blocks: q (G, TQ, D), k/v (G, Sk, D), mask (G, TQ, Sk) int8.
    q = q_ref[...]
    k = k_ref[...]
    v = v_ref[...]
    keep = m_ref[...] != 0                               # (G, TQ, Sk) bool

    # Fold 1/sqrt(D) into Q: Sq*D multiplies instead of Sq*Sk.
    qs = q * jnp.asarray(scale, dtype=q.dtype)

    # Q @ K^T as batched dot_general contracting the last dims (no k.T),
    # operands in the input dtype, f32 MXU accumulator.
    scores = jnp.einsum("gqd,gkd->gqk", qs, k,
                        preferred_element_type=jnp.float32)   # (G, TQ, Sk)

    # masked_fill(~mask, -1e9), matching the PyTorch module exactly
    # (fully-masked rows yield a uniform softmax, same as the reference).
    scores = jnp.where(keep, scores, jnp.float32(-1e9))

    # Numerically-stable softmax in f32.
    m = jnp.max(scores, axis=-1, keepdims=True)
    p = jnp.exp(scores - m)
    denom = jnp.sum(p, axis=-1, keepdims=True)
    inv = pl.reciprocal(denom, approx=True)              # EUP slot, frees VALU
    attn = p * inv

    attn_ref[...] = attn.astype(attn_ref.dtype)
    out = jnp.einsum("gqk,gkd->gqd", attn.astype(v.dtype), v,
                     preferred_element_type=jnp.float32)      # (G, TQ, D)
    out_ref[...] = out.astype(out_ref.dtype)


def _choose_q_tile(Sq):
    """Largest Sq tile that keeps per-step VMEM bounded but steps fat."""
    if Sq <= 256:
        return Sq
    for cand in (256, 128):
        if Sq % cand == 0:
            return cand
    return Sq  # fallback: full rows


def _choose_group(BH, TQ, Sk, D, itemsize, budget_bytes=4 * 1024 * 1024):
    """Heads per grid step: biggest divisor of BH fitting a per-step budget."""
    per_head = (
        TQ * D * itemsize          # q tile
        + 2 * Sk * D * itemsize    # k, v (resident across Sq axis)
        + TQ * Sk * 1              # mask (int8)
        + TQ * Sk * itemsize       # attn output tile
        + TQ * D * itemsize        # output tile
        + 2 * TQ * Sk * 4          # f32 scores / probs temporaries
    )
    g = 1
    for cand in range(1, BH + 1):
        if BH % cand == 0 and cand * per_head <= budget_bytes:
            g = cand
    return g


def scaled_dot_product_attention(Q, K, V, mask):
    """Returns (attn_score, output) exactly like the PyTorch module."""
    B, H, Sq, D = Q.shape
    Sk = K.shape[2]
    assert K.shape == (B, H, Sk, D) and V.shape == (B, H, Sk, D)
    assert mask.shape == (B, H, Sq, Sk)

    BH = B * H
    q = Q.reshape(BH, Sq, D)
    k = K.reshape(BH, Sk, D)
    v = V.reshape(BH, Sk, D)
    m8 = mask.reshape(BH, Sq, Sk).astype(jnp.int8)       # 1 byte/elem stream

    itemsize = jnp.dtype(Q.dtype).itemsize
    TQ = _choose_q_tile(Sq)
    G = _choose_group(BH, TQ, Sk, D, itemsize)
    n_groups = BH // G
    n_qtiles = Sq // TQ

    kernel = functools.partial(_sdpa_kernel, scale=1.0 / math.sqrt(D))

    attn, out = pl.pallas_call(
        kernel,
        out_shape=(
            jax.ShapeDtypeStruct((BH, Sq, Sk), Q.dtype),   # attn in input dtype
            jax.ShapeDtypeStruct((BH, Sq, D), Q.dtype),
        ),
        grid=(n_groups, n_qtiles),
        in_specs=[
            pl.BlockSpec((G, TQ, D), lambda gi, qi: (gi, qi, 0)),   # Q
            pl.BlockSpec((G, Sk, D), lambda gi, qi: (gi, 0, 0)),    # K (resident)
            pl.BlockSpec((G, Sk, D), lambda gi, qi: (gi, 0, 0)),    # V (resident)
            pl.BlockSpec((G, TQ, Sk), lambda gi, qi: (gi, qi, 0)),  # mask
        ],
        out_specs=(
            pl.BlockSpec((G, TQ, Sk), lambda gi, qi: (gi, qi, 0)),  # attn
            pl.BlockSpec((G, TQ, D), lambda gi, qi: (gi, qi, 0)),   # output
        ),
        compiler_params=pltpu.CompilerParams(
            dimension_semantics=("parallel", "parallel")),
    )(q, k, v, m8)

    return attn.reshape(B, H, Sq, Sk), out.reshape(B, H, Sq, D)


def _reference(Q, K, V, mask):
    d = Q.shape[-1]
    scores = jnp.einsum("bhqd,bhkd->bhqk", Q, K) / math.sqrt(d)
    scores = jnp.where(mask, scores, -1e9)
    attn = jax.nn.softmax(scores, axis=-1)
    out = jnp.einsum("bhqk,bhkd->bhqd", attn, V)
    return attn, out


if __name__ == "__main__":
    B, H, S, D = 2, 4, 8, 32

    key = jax.random.PRNGKey(0)
    kq, kk, kv, km = jax.random.split(key, 4)
    Q = jax.random.normal(kq, (B, H, S, D), dtype=jnp.float32)
    K = jax.random.normal(kk, (B, H, S, D), dtype=jnp.float32)
    V = jax.random.normal(kv, (B, H, S, D), dtype=jnp.float32)
    mask = jax.random.bernoulli(km, p=0.8, shape=(B, H, S, S))

    attn, out = scaled_dot_product_attention(Q, K, V, mask)
    jax.block_until_ready((attn, out))

    attn_ref, out_ref = _reference(Q, K, V, mask)
    # Slightly relaxed tolerance: softmax denominator uses the approximate
    # EUP reciprocal (pl.reciprocal(..., approx=True)).
    assert jnp.allclose(attn, attn_ref, atol=2e-3, rtol=2e-3)
    assert jnp.allclose(out, out_ref, atol=2e-3, rtol=2e-3)

    print("KERNEL_OK")
</pallas_src>

<mosaic_0001>
module attributes {stable_mosaic.version = 11 : i64} {
  func.func @_sdpa_kernel(%arg0: i32, %arg1: i32, %arg2: memref<8x8x32xf32, #tpu.memory_space<vmem>>, %arg3: memref<8x8x32xf32, #tpu.memory_space<vmem>>, %arg4: memref<8x8x32xf32, #tpu.memory_space<vmem>>, %arg5: memref<8x8x8xi8, #tpu.memory_space<vmem>>, %arg6: memref<8x8x8xf32, #tpu.memory_space<vmem>>, %arg7: memref<8x8x32xf32, #tpu.memory_space<vmem>>) attributes {dimension_semantics = [#tpu.dimension_semantics<parallel>, #tpu.dimension_semantics<parallel>], iteration_bounds = array<i64: 1, 1>, scalar_prefetch = 0 : i64, scratch_operands = 0 : i64, tpu.core_type = #tpu.core_type<tc>, window_params = [{transform_indices = @transform_0, window_bounds = array<i64: 8, 8, 32>}, {transform_indices = @transform_1, window_bounds = array<i64: 8, 8, 32>}, {transform_indices = @transform_2, window_bounds = array<i64: 8, 8, 32>}, {transform_indices = @transform_3, window_bounds = array<i64: 8, 8, 8>}, {transform_indices = @transform_4, window_bounds = array<i64: 8, 8, 8>}, {transform_indices = @transform_5, window_bounds = array<i64: 8, 8, 32>}]} {
    %c0 = arith.constant 0 : index
    %c0_0 = arith.constant 0 : index
    %c0_1 = arith.constant 0 : index
    %0 = vector.load %arg2[%c0, %c0_0, %c0_1] : memref<8x8x32xf32, #tpu.memory_space<vmem>>, vector<8x8x32xf32>
    %c0_2 = arith.constant 0 : index
    %c0_3 = arith.constant 0 : index
    %c0_4 = arith.constant 0 : index
    %1 = vector.load %arg3[%c0_2, %c0_3, %c0_4] : memref<8x8x32xf32, #tpu.memory_space<vmem>>, vector<8x8x32xf32>
    %c0_5 = arith.constant 0 : index
    %c0_6 = arith.constant 0 : index
    %c0_7 = arith.constant 0 : index
    %2 = vector.load %arg4[%c0_5, %c0_6, %c0_7] : memref<8x8x32xf32, #tpu.memory_space<vmem>>, vector<8x8x32xf32>
    %c0_8 = arith.constant 0 : index
    %c0_9 = arith.constant 0 : index
    %c0_10 = arith.constant 0 : index
    %3 = vector.load %arg5[%c0_8, %c0_9, %c0_10] : memref<8x8x8xi8, #tpu.memory_space<vmem>>, vector<8x8x8xi8>
    %c0_i8 = arith.constant 0 : i8
    %4 = vector.broadcast %c0_i8 : i8 to vector<8x8x8xi8>
    %5 = arith.cmpi ne, %3, %4 : vector<8x8x8xi8>
    %cst = arith.constant 0.176776692 : f32
    %6 = vector.broadcast %cst : f32 to vector<8x8x32xf32>
    %7 = arith.mulf %0, %6 : vector<8x8x32xf32>
    "tpu.trace_start"() <{level = 10 : i32, message = "gqd,gkd->gqk"}> : () -> ()
    %cst_11 = arith.constant dense<0.000000e+00> : vector<8x8x8xf32>
    %8 = tpu.matmul %7, %1, %cst_11 {dimension_numbers = #tpu.dot_dimension_numbers<[2], [2], [1], [1], [0, 0, 0, 1, 1, 1], [0], [0]>} : vector<8x8x32xf32>, vector<8x8x32xf32>, vector<8x8x8xf32> -> vector<8x8x8xf32>
    %cst_12 = arith.constant -1.000000e+09 : f32
    "tpu.trace_stop"() : () -> ()
    %9 = vector.broadcast %cst_12 : f32 to vector<8x8x8xf32>
    %10 = arith.select %5, %8, %9 : vector<8x8x8xi1>, vector<8x8x8xf32>
    %cst_13 = arith.constant dense<0xFF800000> : vector<8x8xf32>
    %11 = vector.multi_reduction <maximumf>, %10, %cst_13 [2] : vector<8x8x8xf32> to vector<8x8xf32>
    %12 = vector.shape_cast %11 : vector<8x8xf32> to vector<8x8x1xf32>
    %13 = vector.broadcast %12 : vector<8x8x1xf32> to vector<8x8x8xf32>
    %14 = arith.subf %10, %13 : vector<8x8x8xf32>
    %15 = math.exp %14 : vector<8x8x8xf32>
    %cst_14 = arith.constant dense<0.000000e+00> : vector<8x8xf32>
    %16 = vector.multi_reduction <add>, %15, %cst_14 [2] : vector<8x8x8xf32> to vector<8x8xf32>
    %17 = vector.shape_cast %16 : vector<8x8xf32> to vector<8x8x1xf32>
    %18 = tpu.reciprocal %17 {approx = true} : vector<8x8x1xf32> -> vector<8x8x1xf32>
    %19 = vector.broadcast %18 : vector<8x8x1xf32> to vector<8x8x8xf32>
    %20 = arith.mulf %15, %19 : vector<8x8x8xf32>
    %c0_15 = arith.constant 0 : index
    %c0_16 = arith.constant 0 : index
    %c0_17 = arith.constant 0 : index
    %21 = vector.load %arg6[%c0_15, %c0_16, %c0_17] : memref<8x8x8xf32, #tpu.memory_space<vmem>>, vector<8x8x8xf32>
    tpu.vector_store %arg6[%c0_15, %c0_16, %c0_17], %20 {strides = array<i32>} : memref<8x8x8xf32, #tpu.memory_space<vmem>>, vector<8x8x8xf32>,
    "tpu.trace_start"() <{level = 10 : i32, message = "gqk,gkd->gqd"}> : () -> ()
    %cst_18 = arith.constant dense<0.000000e+00> : vector<8x8x32xf32>
    %22 = tpu.matmul %20, %2, %cst_18 {dimension_numbers = #tpu.dot_dimension_numbers<[2], [1], [1], [2], [0, 0, 0, 1, 1, 2], [0], [0]>} : vector<8x8x8xf32>, vector<8x8x32xf32>, vector<8x8x32xf32> -> vector<8x8x32xf32>
    "tpu.trace_stop"() : () -> ()
    %c0_19 = arith.constant 0 : index
    %c0_20 = arith.constant 0 : index
    %c0_21 = arith.constant 0 : index
    %23 = vector.load %arg7[%c0_19, %c0_20, %c0_21] : memref<8x8x32xf32, #tpu.memory_space<vmem>>, vector<8x8x32xf32>
    tpu.vector_store %arg7[%c0_19, %c0_20, %c0_21], %22 {strides = array<i32>} : memref<8x8x32xf32, #tpu.memory_space<vmem>>, vector<8x8x32xf32>,
    return
  }
  func.func @transform_0(%arg0: i32, %arg1: i32) -> (i32, i32, i32) {
    %c0_i32 = arith.constant 0 : i32
    %c0_i32_0 = arith.constant 0 : i32
    return %arg0, %arg1, %c0_i32 : i32, i32, i32
  }
  func.func @transform_1(%arg0: i32, %arg1: i32) -> (i32, i32, i32) {
    %c0_i32 = arith.constant 0 : i32
    %c0_i32_0 = arith.constant 0 : i32
    %c0_i32_1 = arith.constant 0 : i32
    return %arg0, %c0_i32, %c0_i32_0 : i32, i32, i32
  }
  func.func @transform_2(%arg0: i32, %arg1: i32) -> (i32, i32, i32) {
    %c0_i32 = arith.constant 0 : i32
    %c0_i32_0 = arith.constant 0 : i32
    %c0_i32_1 = arith.constant 0 : i32
    return %arg0, %c0_i32, %c0_i32_0 : i32, i32, i32
  }
  func.func @transform_3(%arg0: i32, %arg1: i32) -> (i32, i32, i32) {
    %c0_i32 = arith.constant 0 : i32
    %c0_i32_0 = arith.constant 0 : i32
    return %arg0, %arg1, %c0_i32 : i32, i32, i32
  }
  func.func @transform_4(%arg0: i32, %arg1: i32) -> (i32, i32, i32) {
    %c0_i32 = arith.constant 0 : i32
    %c0_i32_0 = arith.constant 0 : i32
    return %arg0, %arg1, %c0_i32 : i32, i32, i32
  }
  func.func @transform_5(%arg0: i32, %arg1: i32) -> (i32, i32, i32) {
    %c0_i32 = arith.constant 0 : i32
    %c0_i32_0 = arith.constant 0 : i32
    return %arg0, %arg1, %c0_i32 : i32, i32, i32
  }
}

</mosaic_0001>

<llo_original>
// kernel: tpu_custom_call.1
$region0: #{tpu_custom_call.1}
  #allocation0 [shape = 'u32[]', space=smem, size = 0x4, offset = 0x4, fixed_abs, tag = 'smem constant byte address 0x4 - core index']
  #allocation1 [shape = 'u32[144,128]{1,0:T(1,128)}', space=vmem, size = 0x12000, scoped, tag = 'internal scratch']
  %s0 = inlined_call_operand.hbm [shape: f32[8,8,32], index: 0, kind: input, shape index: {}]
  %s1 = inlined_call_operand.hbm [shape: f32[8,8,32], index: 1, kind: input, shape index: {}]
  %s2 = inlined_call_operand.hbm [shape: f32[8,8,32], index: 2, kind: input, shape index: {}]
  %s3 = inlined_call_operand.hbm [shape: s8[8,8,8], index: 3, kind: input, shape index: {}]
  %s4 = inlined_call_operand.hbm [shape: f32[8,8,8], index: 4, kind: output, shape index: {0}]
  %s5 = inlined_call_operand.hbm [shape: f32[8,8,32], index: 5, kind: output, shape index: {1}]
  %6 = xla_tuple %s4, %s5
  %s7 = sld [smem:[#allocation0]]
  $region50: #{tpu_custom_call.1} parent=0
    _
  %s9 = ssub.s32 1, %s7
  %s10 = scalar_select 0, %s9, %s7
  $region1: #{tpu_custom_call.1} parent=0
    #allocation2 [shape = 'u8[32768]{0}', space=vmem, size = 0x8000, scoped, tag = 'input window, operand 0, single buffered']
    #allocation3 [shape = 's32[1]{0}', space=sflag, size = 0x4, scoped, tag = 'scoped memory for tpu_custom_call.1']
    #allocation4 [shape = 's32[1]{0}', space=sflag, size = 0x4, scoped, tag = 'scoped memory for tpu_custom_call.1']
    #allocation5 [shape = 'u8[32768]{0}', space=vmem, size = 0x8000, scoped, tag = 'input window, operand 1, single buffered']
    #allocation6 [shape = 's32[1]{0}', space=sflag, size = 0x4, scoped, tag = 'scoped memory for tpu_custom_call.1']
    #allocation7 [shape = 'u8[32768]{0}', space=vmem, size = 0x8000, scoped, tag = 'input window, operand 2, single buffered']
    #allocation8 [shape = 'u8[8192]{0}', space=vmem, size = 0x2000, scoped, tag = 'input window, operand 3, single buffered']
    #allocation9 [shape = 's32[1]{0}', space=sflag, size = 0x4, scoped, tag = 'scoped memory for tpu_custom_call.1']
    #allocation10 [shape = 'u8[32768]{0}', space=vmem, size = 0x8000, scoped, tag = 'output window, operand 0, single buffered']
    #allocation11 [shape = 'u8[32768]{0}', space=vmem, size = 0x8000, scoped, tag = 'output window, operand 1, single buffered']
    #allocation12 [shape = 's32[1]{0}', space=sflag, size = 0x4, scoped, tag = 'scoped memory for tpu_custom_call.1']
    %11 = vsyncpa [#allocation3], 0
    %12 = vsyncpa [#allocation6], 0
    %13 = vsyncpa [#allocation9], 0
    %14 = vsyncpa [#allocation4], 0
    %15 = vsyncpa [#allocation12], 0
    // Predicated region
    $region2: #{tpu_custom_call.1} parent=1 // pred_check
      _
    $region3: #{tpu_custom_call.1} parent=1 // pred_check_branch
      %17 = sbr.rel (0) target = $region5
    $region4: #{tpu_custom_call.1} parent=1 // pred_region
      %s19 = ssub.s32 1024, 1024
      %20 = vsyncadd [#allocation3], %s19
      %s21 = sshll.u32 [#allocation2], 4
      %s22 = int_to_ptr.vmem [resolvable:$true] %s21
      %27 = dma.hbm_to_vmem [thread:$0]  %s0, 1024, %s22, [#allocation3], 128, 128, 8
    $region5: #{tpu_custom_call.1} parent=1 // pred_fallthru
      _
    // Predicated region
    $region6: #{tpu_custom_call.1} parent=1 // pred_check
      _
    $region7: #{tpu_custom_call.1} parent=1 // pred_check_branch
      %29 = sbr.rel (0) target = $region9
    $region8: #{tpu_custom_call.1} parent=1 // pred_region
      %s31 = ssub.s32 1024, 1024
      %32 = vsyncadd [#allocation6], %s31
      %s33 = sshll.u32 [#allocation5], 4
      %s34 = int_to_ptr.vmem [resolvable:$true] %s33
      %39 = dma.hbm_to_vmem [thread:$0]  %s1, 1024, %s34, [#allocation6], 128, 128, 8
    $region9: #{tpu_custom_call.1} parent=1 // pred_fallthru
      _
    // Predicated region
    $region10: #{tpu_custom_call.1} parent=1 // pred_check
      _
    $region11: #{tpu_custom_call.1} parent=1 // pred_check_branch
      %41 = sbr.rel (0) target = $region13
    $region12: #{tpu_custom_call.1} parent=1 // pred_region
      %s43 = ssub.s32 1024, 1024
      %44 = vsyncadd [#allocation6], %s43
      %s45 = sshll.u32 [#allocation7], 4
      %s46 = int_to_ptr.vmem [resolvable:$true] %s45
      %51 = dma.hbm_to_vmem [thread:$0]  %s2, 1024, %s46, [#allocation6], 128, 128, 8
    $region13: #{tpu_custom_call.1} parent=1 // pred_fallthru
      _
    // Predicated region
    $region14: #{tpu_custom_call.1} parent=1 // pred_check
      _
    $region15: #{tpu_custom_call.1} parent=1 // pred_check_branch
      %53 = sbr.rel (0) target = $region17
    $region16: #{tpu_custom_call.1} parent=1 // pred_region
      %s55 = ssub.s32 256, 256
      %56 = vsyncadd [#allocation9], %s55
      %s57 = sshll.u32 [#allocation8], 4
      %s58 = int_to_ptr.vmem [resolvable:$true] %s57
      %63 = dma.hbm_to_vmem [thread:$0]  %s3, 256, %s58, [#allocation9], 32, 32, 2
    $region17: #{tpu_custom_call.1} parent=1 // pred_fallthru
      _
    // Predicated region
    $region18: #{tpu_custom_call.1} parent=1 // pred_check
      _
    $region19: #{tpu_custom_call.1} parent=1 // pred_check_branch
      %65 = sbr.rel (0) target = $region21
    $region20: #{tpu_custom_call.1} parent=1 // pred_region
      %66 = dma.done [#allocation3], 1024
    $region21: #{tpu_custom_call.1} parent=1 // pred_fallthru
      _
    // Predicated region
    $region22: #{tpu_custom_call.1} parent=1 // pred_check
      _
    $region23: #{tpu_custom_call.1} parent=1 // pred_check_branch
      %68 = sbr.rel (0) target = $region25
    $region24: #{tpu_custom_call.1} parent=1 // pred_region
      %69 = dma.done [#allocation6], 1024
    $region25: #{tpu_custom_call.1} parent=1 // pred_fallthru
      _
    // Predicated region
    $region26: #{tpu_custom_call.1} parent=1 // pred_check
      _
    $region27: #{tpu_custom_call.1} parent=1 // pred_check_branch
      %71 = sbr.rel (0) target = $region29
    $region28: #{tpu_custom_call.1} parent=1 // pred_region
      %72 = dma.done [#allocation6], 1024
    $region29: #{tpu_custom_call.1} parent=1 // pred_fallthru
      _
    // Predicated region
    $region30: #{tpu_custom_call.1} parent=1 // pred_check
      _
    $region31: #{tpu_custom_call.1} parent=1 // pred_check_branch
      %74 = sbr.rel (0) target = $region33
    $region32: #{tpu_custom_call.1} parent=1 // pred_region
      %75 = dma.done [#allocation9], 256
    $region33: #{tpu_custom_call.1} parent=1 // pred_fallthru
      _
    %v78 = vld [vmem:[#allocation2] sm:$0xff]
    %v79 = vld [vmem:[#allocation2 + $0x8] sm:$0xff]
    %v80 = vld [vmem:[#allocation2 + $0x10] sm:$0xff]
    %v81 = vld [vmem:[#allocation2 + $0x18] sm:$0xff]
    %v82 = vld [vmem:[#allocation2 + $0x20] sm:$0xff]
    %v83 = vld [vmem:[#allocation2 + $0x28] sm:$0xff]
    %v84 = vld [vmem:[#allocation2 + $0x30] sm:$0xff]
    %v85 = vld [vmem:[#allocation2 + $0x38] sm:$0xff]
    %v86 = vld [vmem:[#allocation5] sm:$0xff]
    %v87 = vld [vmem:[#allocation5 + $0x8] sm:$0xff]
    %v88 = vld [vmem:[#allocation5 + $0x10] sm:$0xff]
    %v89 = vld [vmem:[#allocation5 + $0x18] sm:$0xff]
    %v90 = vld [vmem:[#allocation5 + $0x20] sm:$0xff]
    %v91 = vld [vmem:[#allocation5 + $0x28] sm:$0xff]
    %v92 = vld [vmem:[#allocation5 + $0x30] sm:$0xff]
    %v93 = vld [vmem:[#allocation5 + $0x38] sm:$0xff]
    %v94 = vld [vmem:[#allocation7] sm:$0xff]
    %v95 = vld [vmem:[#allocation7 + $0x8] sm:$0xff]
    %v96 = vld [vmem:[#allocation7 + $0x10] sm:$0xff]
    %v97 = vld [vmem:[#allocation7 + $0x18] sm:$0xff]
    %v98 = vld [vmem:[#allocation7 + $0x20] sm:$0xff]
    %v99 = vld [vmem:[#allocation7 + $0x28] sm:$0xff]
    %v100 = vld [vmem:[#allocation7 + $0x30] sm:$0xff]
    %v101 = vld [vmem:[#allocation7 + $0x38] sm:$0xff]
    %v102 = vld [vmem:[#allocation8] sm:$0x3]
    %v103 = vld [vmem:[#allocation8 + $0x2] sm:$0x3]
    %v104 = vld [vmem:[#allocation8 + $0x4] sm:$0x3]
    %v105 = vld [vmem:[#allocation8 + $0x6] sm:$0x3]
    %v106 = vld [vmem:[#allocation8 + $0x8] sm:$0x3]
    %v107 = vld [vmem:[#allocation8 + $0xa] sm:$0x3]
    %v108 = vld [vmem:[#allocation8 + $0xc] sm:$0x3]
    %v109 = vld [vmem:[#allocation8 + $0xe] sm:$0x3]
    %vm110 = vnez %v102
    %vm111 = vnez %v103
    %vm112 = vnez %v104
    %vm113 = vnez %v105
    %vm114 = vnez %v106
    %vm115 = vnez %v107
    %vm116 = vnez %v108
    %vm117 = vnez %v109
    %v118 = vmul.f32 %v78, 0.17677669
    %v119 = vmul.f32 %v79, 0.17677669
    %v120 = vmul.f32 %v80, 0.17677669
    %v121 = vmul.f32 %v81, 0.17677669
    %v122 = vmul.f32 %v82, 0.17677669
    %v123 = vmul.f32 %v83, 0.17677669
    %v124 = vmul.f32 %v84, 0.17677669
    %v125 = vmul.f32 %v85, 0.17677669
    %vm126 = vcmask 261120
    %v128 = vsel %vm126, %v118, 0
    %v131 = vsel %vm126, %v86, 0
    %133 = vmatprep.subr.mxu0 0.0
    %134 = vmatpush1.xpose.msra.mxu0 0.0
    %135 = vmatprep.subr.mxu0 0.0
    %136 = vmatpush1.xpose.msra.mxu0 0.0
    %137 = vmatprep.subr.mxu0 0.0
    %138 = vmatpush1.xpose.msra.mxu0 0.0
    %139 = vmatprep.subr.mxu0 0.0
    %140 = vmatpush1.xpose.msra.mxu0 0.0
    %141 = vmatprep.subr.mxu0 0.0
    %142 = vmatpush1.xpose.msra.mxu0 0.0
    %143 = vmatprep.subr.mxu0 0.0
    %144 = vmatpush1.xpose.msra.mxu0 0.0
    %145 = vmatprep.subr.mxu0 0.0
    %146 = vmatpush1.xpose.msra.mxu0 0.0
    %147 = vmatprep.subr.mxu0 0.0
    %148 = vmatpush1.xpose.msra.mxu0 0.0
    %149 = vmatprep.subr.mxu0 0.0
    %150 = vmatpush1.xpose.msra.mxu0 0.0
    %151 = vmatprep.subr.mxu0 0.0
    %152 = vmatpush1.xpose.msra.mxu0 0.0
    %153 = vmatprep.subr.mxu0 0.0
    %154 = vmatpush1.xpose.msra.mxu0 0.0
    %155 = vmatprep.subr.mxu0 0.0
    %156 = vmatpush1.xpose.msra.mxu0 0.0
    %157 = vmatprep.subr.mxu0 0.0
    %158 = vmatpush1.xpose.msra.mxu0 0.0
    %159 = vmatprep.subr.mxu0 0.0
    %160 = vmatpush1.xpose.msra.mxu0 0.0
    %161 = vmatprep.subr.mxu0 0.0
    %162 = vmatpush1.xpose.msra.mxu0 0.0
    %163 = vmatprep.subr.mxu0 0.0
    %164 = vmatpush1.xpose.msra.mxu0 %v131
    %165 = vmatprep.subr.mxu0 0.0
    %166 = vmatpush2.xpose.msra.mxu0 0.0
    %167 = vmatprep.subr.mxu0 0.0
    %168 = vmatpush2.xpose.msra.mxu0 0.0
    %169 = vmatprep.subr.mxu0 0.0
    %170 = vmatpush2.xpose.msra.mxu0 0.0
    %171 = vmatprep.subr.mxu0 0.0
    %172 = vmatpush2.xpose.msra.mxu0 0.0
    %173 = vmatprep.subr.mxu0 0.0
    %174 = vmatpush2.xpose.msra.mxu0 0.0
    %175 = vmatprep.subr.mxu0 0.0
    %176 = vmatpush2.xpose.msra.mxu0 0.0
    %177 = vmatprep.subr.mxu0 0.0
    %178 = vmatpush2.xpose.msra.mxu0 0.0
    %179 = vmatprep.subr.mxu0 0.0
    %180 = vmatpush2.xpose.msra.mxu0 0.0
    %181 = vmatprep.subr.mxu0 0.0
    %182 = vmatpush2.xpose.msra.mxu0 0.0
    %183 = vmatprep.subr.mxu0 0.0
    %184 = vmatpush2.xpose.msra.mxu0 0.0
    %185 = vmatprep.subr.mxu0 0.0
    %186 = vmatpush2.xpose.msra.mxu0 0.0
    %187 = vmatprep.subr.mxu0 0.0
    %188 = vmatpush2.xpose.msra.mxu0 0.0
    %189 = vmatprep.subr.mxu0 0.0
    %190 = vmatpush2.xpose.msra.mxu0 0.0
    %191 = vmatprep.subr.mxu0 0.0
    %192 = vmatpush2.xpose.msra.mxu0 0.0
    %193 = vmatprep.subr.mxu0 0.0
    %194 = vmatpush2.xpose.msra.mxu0 0.0
    %195 = vmatprep.subr.mxu0 0.0
    %196 = vmatpush2.xpose.msra.mxu0 0.0
    %197 = vmatprep.mubr.f32.mxu0 0.0
    %198 = vmatmul.mubr.f32.gmra.mxu0 %v128
    %v199 = vpop.f32.mrf.mxu0
    %v200 = vadd.f32 0.0, %v199
    %v201 = vpop.f32.mrf.mxu0
    %202 = vdwg.mxu0
    %v204 = vsel %vm126, %v119, 0
    %v207 = vsel %vm126, %v87, 0
    %209 = vmatprep.subr.mxu0 0.0
    %210 = vmatpush1.xpose.msra.mxu0 0.0
    %211 = vmatprep.subr.mxu0 0.0
    %212 = vmatpush1.xpose.msra.mxu0 0.0
    %213 = vmatprep.subr.mxu0 0.0
    %214 = vmatpush1.xpose.msra.mxu0 0.0
    %215 = vmatprep.subr.mxu0 0.0
    %216 = vmatpush1.xpose.msra.mxu0 0.0
    %217 = vmatprep.subr.mxu0 0.0
    %218 = vmatpush1.xpose.msra.mxu0 0.0
    %219 = vmatprep.subr.mxu0 0.0
    %220 = vmatpush1.xpose.msra.mxu0 0.0
    %221 = vmatprep.subr.mxu0 0.0
    %222 = vmatpush1.xpose.msra.mxu0 0.0
    %223 = vmatprep.subr.mxu0 0.0
    %224 = vmatpush1.xpose.msra.mxu0 0.0
    %225 = vmatprep.subr.mxu0 0.0
    %226 = vmatpush1.xpose.msra.mxu0 0.0
    %227 = vmatprep.subr.mxu0 0.0
    %228 = vmatpush1.xpose.msra.mxu0 0.0
    %229 = vmatprep.subr.mxu0 0.0
    %230 = vmatpush1.xpose.msra.mxu0 0.0
    %231 = vmatprep.subr.mxu0 0.0
    %232 = vmatpush1.xpose.msra.mxu0 0.0
    %233 = vmatprep.subr.mxu0 0.0
    %234 = vmatpush1.xpose.msra.mxu0 0.0
    %235 = vmatprep.subr.mxu0 0.0
    %236 = vmatpush1.xpose.msra.mxu0 0.0
    %237 = vmatprep.subr.mxu0 0.0
    %238 = vmatpush1.xpose.msra.mxu0 0.0
    %239 = vmatprep.subr.mxu0 0.0
    %240 = vmatpush1.xpose.msra.mxu0 %v207
    %241 = vmatprep.subr.mxu0 0.0
    %242 = vmatpush2.xpose.msra.mxu0 0.0
    %243 = vmatprep.subr.mxu0 0.0
    %244 = vmatpush2.xpose.msra.mxu0 0.0
    %245 = vmatprep.subr.mxu0 0.0
    %246 = vmatpush2.xpose.msra.mxu0 0.0
    %247 = vmatprep.subr.mxu0 0.0
    %248 = vmatpush2.xpose.msra.mxu0 0.0
    %249 = vmatprep.subr.mxu0 0.0
    %250 = vmatpush2.xpose.msra.mxu0 0.0
    %251 = vmatprep.subr.mxu0 0.0
    %252 = vmatpush2.xpose.msra.mxu0 0.0
    %253 = vmatprep.subr.mxu0 0.0
    %254 = vmatpush2.xpose.msra.mxu0 0.0
    %255 = vmatprep.subr.mxu0 0.0
    %256 = vmatpush2.xpose.msra.mxu0 0.0
    %257 = vmatprep.subr.mxu0 0.0
    %258 = vmatpush2.xpose.msra.mxu0 0.0
    %259 = vmatprep.subr.mxu0 0.0
    %260 = vmatpush2.xpose.msra.mxu0 0.0
    %261 = vmatprep.subr.mxu0 0.0
    %262 = vmatpush2.xpose.msra.mxu0 0.0
    %263 = vmatprep.subr.mxu0 0.0
    %264 = vmatpush2.xpose.msra.mxu0 0.0
    %265 = vmatprep.subr.mxu0 0.0
    %266 = vmatpush2.xpose.msra.mxu0 0.0
    %267 = vmatprep.subr.mxu0 0.0
    %268 = vmatpush2.xpose.msra.mxu0 0.0
    %269 = vmatprep.subr.mxu0 0.0
    %270 = vmatpush2.xpose.msra.mxu0 0.0
    %271 = vmatprep.subr.mxu0 0.0
    %272 = vmatpush2.xpose.msra.mxu0 0.0
    %273 = vmatprep.mubr.f32.mxu0 0.0
    %274 = vmatmul.mubr.f32.gmra.mxu0 %v204
    %v275 = vpop.f32.mrf.mxu0
    %v276 = vadd.f32 0.0, %v275
    %v277 = vpop.f32.mrf.mxu0
    %278 = vdwg.mxu0
    %v280 = vsel %vm126, %v120, 0
    %v283 = vsel %vm126, %v88, 0
    %285 = vmatprep.subr.mxu0 0.0
    %286 = vmatpush1.xpose.msra.mxu0 0.0
    %287 = vmatprep.subr.mxu0 0.0
    %288 = vmatpush1.xpose.msra.mxu0 0.0
    %289 = vmatprep.subr.mxu0 0.0
    %290 = vmatpush1.xpose.msra.mxu0 0.0
    %291 = vmatprep.subr.mxu0 0.0
    %292 = vmatpush1.xpose.msra.mxu0 0.0
    %293 = vmatprep.subr.mxu0 0.0
    %294 = vmatpush1.xpose.msra.mxu0 0.0
    %295 = vmatprep.subr.mxu0 0.0
    %296 = vmatpush1.xpose.msra.mxu0 0.0
    %297 = vmatprep.subr.mxu0 0.0
    %298 = vmatpush1.xpose.msra.mxu0 0.0
    %299 = vmatprep.subr.mxu0 0.0
    %300 = vmatpush1.xpose.msra.mxu0 0.0
    %301 = vmatprep.subr.mxu0 0.0
    %302 = vmatpush1.xpose.msra.mxu0 0.0
    %303 = vmatprep.subr.mxu0 0.0
    %304 = vmatpush1.xpose.msra.mxu0 0.0
    %305 = vmatprep.subr.mxu0 0.0
    %306 = vmatpush1.xpose.msra.mxu0 0.0
    %307 = vmatprep.subr.mxu0 0.0
    %308 = vmatpush1.xpose.msra.mxu0 0.0
    %309 = vmatprep.subr.mxu0 0.0
    %310 = vmatpush1.xpose.msra.mxu0 0.0
    %311 = vmatprep.subr.mxu0 0.0
    %312 = vmatpush1.xpose.msra.mxu0 0.0
    %313 = vmatprep.subr.mxu0 0.0
    %314 = vmatpush1.xpose.msra.mxu0 0.0
    %315 = vmatprep.subr.mxu0 0.0
    %316 = vmatpush1.xpose.msra.mxu0 %v283
    %317 = vmatprep.subr.mxu0 0.0
    %318 = vmatpush2.xpose.msra.mxu0 0.0
    %319 = vmatprep.subr.mxu0 0.0
    %320 = vmatpush2.xpose.msra.mxu0 0.0
    %321 = vmatprep.subr.mxu0 0.0
    %322 = vmatpush2.xpose.msra.mxu0 0.0
    %323 = vmatprep.subr.mxu0 0.0
    %324 = vmatpush2.xpose.msra.mxu0 0.0
    %325 = vmatprep.subr.mxu0 0.0
    %326 = vmatpush2.xpose.msra.mxu0 0.0
    %327 = vmatprep.subr.mxu0 0.0
    %328 = vmatpush2.xpose.msra.mxu0 0.0
    %329 = vmatprep.subr.mxu0 0.0
    %330 = vmatpush2.xpose.msra.mxu0 0.0
    %331 = vmatprep.subr.mxu0 0.0
    %332 = vmatpush2.xpose.msra.mxu0 0.0
    %333 = vmatprep.subr.mxu0 0.0
    %334 = vmatpush2.xpose.msra.mxu0 0.0
    %335 = vmatprep.subr.mxu0 0.0
    %336 = vmatpush2.xpose.msra.mxu0 0.0
    %337 = vmatprep.subr.mxu0 0.0
    %338 = vmatpush2.xpose.msra.mxu0 0.0
    %339 = vmatprep.subr.mxu0 0.0
    %340 = vmatpush2.xpose.msra.mxu0 0.0
    %341 = vmatprep.subr.mxu0 0.0
    %342 = vmatpush2.xpose.msra.mxu0 0.0
    %343 = vmatprep.subr.mxu0 0.0
    %344 = vmatpush2.xpose.msra.mxu0 0.0
    %345 = vmatprep.subr.mxu0 0.0
    %346 = vmatpush2.xpose.msra.mxu0 0.0
    %347 = vmatprep.subr.mxu0 0.0
    %348 = vmatpush2.xpose.msra.mxu0 0.0
    %349 = vmatprep.mubr.f32.mxu0 0.0
    %350 = vmatmul.mubr.f32.gmra.mxu0 %v280
    %v351 = vpop.f32.mrf.mxu0
    %v352 = vadd.f32 0.0, %v351
    %v353 = vpop.f32.mrf.mxu0
    %354 = vdwg.mxu0
    %v356 = vsel %vm126, %v121, 0
    %v359 = vsel %vm126, %v89, 0
    %361 = vmatprep.subr.mxu0 0.0
    %362 = vmatpush1.xpose.msra.mxu0 0.0
    %363 = vmatprep.subr.mxu0 0.0
    %364 = vmatpush1.xpose.msra.mxu0 0.0
    %365 = vmatprep.subr.mxu0 0.0
    %366 = vmatpush1.xpose.msra.mxu0 0.0
    %367 = vmatprep.subr.mxu0 0.0
    %368 = vmatpush1.xpose.msra.mxu0 0.0
    %369 = vmatprep.subr.mxu0 0.0
    %370 = vmatpush1.xpose.msra.mxu0 0.0
    %371 = vmatprep.subr.mxu0 0.0
    %372 = vmatpush1.xpose.msra.mxu0 0.0
    %373 = vmatprep.subr.mxu0 0.0
    %374 = vmatpush1.xpose.msra.mxu0 0.0
    %375 = vmatprep.subr.mxu0 0.0
    %376 = vmatpush1.xpose.msra.mxu0 0.0
    %377 = vmatprep.subr.mxu0 0.0
    %378 = vmatpush1.xpose.msra.mxu0 0.0
    %379 = vmatprep.subr.mxu0 0.0
    %380 = vmatpush1.xpose.msra.mxu0 0.0
    %381 = vmatprep.subr.mxu0 0.0
    %382 = vmatpush1.xpose.msra.mxu0 0.0
    %383 = vmatprep.subr.mxu0 0.0
    %384 = vmatpush1.xpose.msra.mxu0 0.0
    %385 = vmatprep.subr.mxu0 0.0
    %386 = vmatpush1.xpose.msra.mxu0 0.0
    %387 = vmatprep.subr.mxu0 0.0
    %388 = vmatpush1.xpose.msra.mxu0 0.0
    %389 = vmatprep.subr.mxu0 0.0
    %390 = vmatpush1.xpose.msra.mxu0 0.0
    %391 = vmatprep.subr.mxu0 0.0
    %392 = vmatpush1.xpose.msra.mxu0 %v359
    %393 = vmatprep.subr.mxu0 0.0
    %394 = vmatpush2.xpose.msra.mxu0 0.0
    %395 = vmatprep.subr.mxu0 0.0
    %396 = vmatpush2.xpose.msra.mxu0 0.0
    %397 = vmatprep.subr.mxu0 0.0
    %398 = vmatpush2.xpose.msra.mxu0 0.0
    %399 = vmatprep.subr.mxu0 0.0
    %400 = vmatpush2.xpose.msra.mxu0 0.0
    %401 = vmatprep.subr.mxu0 0.0
    %402 = vmatpush2.xpose.msra.mxu0 0.0
    %403 = vmatprep.subr.mxu0 0.0
    %404 = vmatpush2.xpose.msra.mxu0 0.0
    %405 = vmatprep.subr.mxu0 0.0
    %406 = vmatpush2.xpose.msra.mxu0 0.0
    %407 = vmatprep.subr.mxu0 0.0
    %408 = vmatpush2.xpose.msra.mxu0 0.0
    %409 = vmatprep.subr.mxu0 0.0
    %410 = vmatpush2.xpose.msra.mxu0 0.0
    %411 = vmatprep.subr.mxu0 0.0
    %412 = vmatpush2.xpose.msra.mxu0 0.0
    %413 = vmatprep.subr.mxu0 0.0
    %414 = vmatpush2.xpose.msra.mxu0 0.0
    %415 = vmatprep.subr.mxu0 0.0
    %416 = vmatpush2.xpose.msra.mxu0 0.0
    %417 = vmatprep.subr.mxu0 0.0
    %418 = vmatpush2.xpose.msra.mxu0 0.0
    %419 = vmatprep.subr.mxu0 0.0
    %420 = vmatpush2.xpose.msra.mxu0 0.0
    %421 = vmatprep.subr.mxu0 0.0
    %422 = vmatpush2.xpose.msra.mxu0 0.0
    %423 = vmatprep.subr.mxu0 0.0
    %424 = vmatpush2.xpose.msra.mxu0 0.0
    %425 = vmatprep.mubr.f32.mxu0 0.0
    %426 = vmatmul.mubr.f32.gmra.mxu0 %v356
    %v427 = vpop.f32.mrf.mxu0
    %v428 = vadd.f32 0.0, %v427
    %v429 = vpop.f32.mrf.mxu0
    %430 = vdwg.mxu0
    %v432 = vsel %vm126, %v122, 0
    %v435 = vsel %vm126, %v90, 0
    %437 = vmatprep.subr.mxu0 0.0
    %438 = vmatpush1.xpose.msra.mxu0 0.0
    %439 = vmatprep.subr.mxu0 0.0
    %440 = vmatpush1.xpose.msra.mxu0 0.0
    %441 = vmatprep.subr.mxu0 0.0
    %442 = vmatpush1.xpose.msra.mxu0 0.0
    %443 = vmatprep.subr.mxu0 0.0
    %444 = vmatpush1.xpose.msra.mxu0 0.0
    %445 = vmatprep.subr.mxu0 0.0
    %446 = vmatpush1.xpose.msra.mxu0 0.0
    %447 = vmatprep.subr.mxu0 0.0
    %448 = vmatpush1.xpose.msra.mxu0 0.0
    %449 = vmatprep.subr.mxu0 0.0
    %450 = vmatpush1.xpose.msra.mxu0 0.0
    %451 = vmatprep.subr.mxu0 0.0
    %452 = vmatpush1.xpose.msra.mxu0 0.0
    %453 = vmatprep.subr.mxu0 0.0
    %454 = vmatpush1.xpose.msra.mxu0 0.0
    %455 = vmatprep.subr.mxu0 0.0
    %456 = vmatpush1.xpose.msra.mxu0 0.0
    %457 = vmatprep.subr.mxu0 0.0
    %458 = vmatpush1.xpose.msra.mxu0 0.0
    %459 = vmatprep.subr.mxu0 0.0
    %460 = vmatpush1.xpose.msra.mxu0 0.0
    %461 = vmatprep.subr.mxu0 0.0
    %462 = vmatpush1.xpose.msra.mxu0 0.0
    %463 = vmatprep.subr.mxu0 0.0
    %464 = vmatpush1.xpose.msra.mxu0 0.0
    %465 = vmatprep.subr.mxu0 0.0
    %466 = vmatpush1.xpose.msra.mxu0 0.0
    %467 = vmatprep.subr.mxu0 0.0
    %468 = vmatpush1.xpose.msra.mxu0 %v435
    %469 = vmatprep.subr.mxu0 0.0
    %470 = vmatpush2.xpose.msra.mxu0 0.0
    %471 = vmatprep.subr.mxu0 0.0
    %472 = vmatpush2.xpose.msra.mxu0 0.0
    %473 = vmatprep.subr.mxu0 0.0
    %474 = vmatpush2.xpose.msra.mxu0 0.0
    %475 = vmatprep.subr.mxu0 0.0
    %476 = vmatpush2.xpose.msra.mxu0 0.0
    %477 = vmatprep.subr.mxu0 0.0
    %478 = vmatpush2.xpose.msra.mxu0 0.0
    %479 = vmatprep.subr.mxu0 0.0
    %480 = vmatpush2.xpose.msra.mxu0 0.0
    %481 = vmatprep.subr.mxu0 0.0
    %482 = vmatpush2.xpose.msra.mxu0 0.0
    %483 = vmatprep.subr.mxu0 0.0
    %484 = vmatpush2.xpose.msra.mxu0 0.0
    %485 = vmatprep.subr.mxu0 0.0
    %486 = vmatpush2.xpose.msra.mxu0 0.0
    %487 = vmatprep.subr.mxu0 0.0
    %488 = vmatpush2.xpose.msra.mxu0 0.0
    %489 = vmatprep.subr.mxu0 0.0
    %490 = vmatpush2.xpose.msra.mxu0 0.0
    %491 = vmatprep.subr.mxu0 0.0
    %492 = vmatpush2.xpose.msra.mxu0 0.0
    %493 = vmatprep.subr.mxu0 0.0
    %494 = vmatpush2.xpose.msra.mxu0 0.0
    %495 = vmatprep.subr.mxu0 0.0
    %496 = vmatpush2.xpose.msra.mxu0 0.0
    %497 = vmatprep.subr.mxu0 0.0
    %498 = vmatpush2.xpose.msra.mxu0 0.0
    %499 = vmatprep.subr.mxu0 0.0
    %500 = vmatpush2.xpose.msra.mxu0 0.0
    %501 = vmatprep.mubr.f32.mxu0 0.0
    %502 = vmatmul.mubr.f32.gmra.mxu0 %v432
    %v503 = vpop.f32.mrf.mxu0
    %v504 = vadd.f32 0.0, %v503
    %v505 = vpop.f32.mrf.mxu0
    %506 = vdwg.mxu0
    %v508 = vsel %vm126, %v123, 0
    %v511 = vsel %vm126, %v91, 0
    %513 = vmatprep.subr.mxu0 0.0
    %514 = vmatpush1.xpose.msra.mxu0 0.0
    %515 = vmatprep.subr.mxu0 0.0
    %516 = vmatpush1.xpose.msra.mxu0 0.0
    %517 = vmatprep.subr.mxu0 0.0
    %518 = vmatpush1.xpose.msra.mxu0 0.0
    %519 = vmatprep.subr.mxu0 0.0
    %520 = vmatpush1.xpose.msra.mxu0 0.0
    %521 = vmatprep.subr.mxu0 0.0
    %522 = vmatpush1.xpose.msra.mxu0 0.0
    %523 = vmatprep.subr.mxu0 0.0
    %524 = vmatpush1.xpose.msra.mxu0 0.0
    %525 = vmatprep.subr.mxu0 0.0
    %526 = vmatpush1.xpose.msra.mxu0 0.0
    %527 = vmatprep.subr.mxu0 0.0
    %528 = vmatpush1.xpose.msra.mxu0 0.0
    %529 = vmatprep.subr.mxu0 0.0
    %530 = vmatpush1.xpose.msra.mxu0 0.0
    %531 = vmatprep.subr.mxu0 0.0
    %532 = vmatpush1.xpose.msra.mxu0 0.0
    %533 = vmatprep.subr.mxu0 0.0
    %534 = vmatpush1.xpose.msra.mxu0 0.0
    %535 = vmatprep.subr.mxu0 0.0
    %536 = vmatpush1.xpose.msra.mxu0 0.0
    %537 = vmatprep.subr.mxu0 0.0
    %538 = vmatpush1.xpose.msra.mxu0 0.0
    %539 = vmatprep.subr.mxu0 0.0
    %540 = vmatpush1.xpose.msra.mxu0 0.0
    %541 = vmatprep.subr.mxu0 0.0
    %542 = vmatpush1.xpose.msra.mxu0 0.0
    %543 = vmatprep.subr.mxu0 0.0
    %544 = vmatpush1.xpose.msra.mxu0 %v511
    %545 = vmatprep.subr.mxu0 0.0
    %546 = vmatpush2.xpose.msra.mxu0 0.0
    %547 = vmatprep.subr.mxu0 0.0
    %548 = vmatpush2.xpose.msra.mxu0 0.0
    %549 = vmatprep.subr.mxu0 0.0
    %550 = vmatpush2.xpose.msra.mxu0 0.0
    %551 = vmatprep.subr.mxu0 0.0
    %552 = vmatpush2.xpose.msra.mxu0 0.0
    %553 = vmatprep.subr.mxu0 0.0
    %554 = vmatpush2.xpose.msra.mxu0 0.0
    %555 = vmatprep.subr.mxu0 0.0
    %556 = vmatpush2.xpose.msra.mxu0 0.0
    %557 = vmatprep.subr.mxu0 0.0
    %558 = vmatpush2.xpose.msra.mxu0 0.0
    %559 = vmatprep.subr.mxu0 0.0
    %560 = vmatpush2.xpose.msra.mxu0 0.0
    %561 = vmatprep.subr.mxu0 0.0
    %562 = vmatpush2.xpose.msra.mxu0 0.0
    %563 = vmatprep.subr.mxu0 0.0
    %564 = vmatpush2.xpose.msra.mxu0 0.0
    %565 = vmatprep.subr.mxu0 0.0
    %566 = vmatpush2.xpose.msra.mxu0 0.0
    %567 = vmatprep.subr.mxu0 0.0
    %568 = vmatpush2.xpose.msra.mxu0 0.0
    %569 = vmatprep.subr.mxu0 0.0
    %570 = vmatpush2.xpose.msra.mxu0 0.0
    %571 = vmatprep.subr.mxu0 0.0
    %572 = vmatpush2.xpose.msra.mxu0 0.0
    %573 = vmatprep.subr.mxu0 0.0
    %574 = vmatpush2.xpose.msra.mxu0 0.0
    %575 = vmatprep.subr.mxu0 0.0
    %576 = vmatpush2.xpose.msra.mxu0 0.0
    %577 = vmatprep.mubr.f32.mxu0 0.0
    %578 = vmatmul.mubr.f32.gmra.mxu0 %v508
    %v579 = vpop.f32.mrf.mxu0
    %v580 = vadd.f32 0.0, %v579
    %v581 = vpop.f32.mrf.mxu0
    %582 = vdwg.mxu0
    %v584 = vsel %vm126, %v124, 0
    %v587 = vsel %vm126, %v92, 0
    %589 = vmatprep.subr.mxu0 0.0
    %590 = vmatpush1.xpose.msra.mxu0 0.0
    %591 = vmatprep.subr.mxu0 0.0
    %592 = vmatpush1.xpose.msra.mxu0 0.0
    %593 = vmatprep.subr.mxu0 0.0
    %594 = vmatpush1.xpose.msra.mxu0 0.0
    %595 = vmatprep.subr.mxu0 0.0
    %596 = vmatpush1.xpose.msra.mxu0 0.0
    %597 = vmatprep.subr.mxu0 0.0
    %598 = vmatpush1.xpose.msra.mxu0 0.0
    %599 = vmatprep.subr.mxu0 0.0
    %600 = vmatpush1.xpose.msra.mxu0 0.0
    %601 = vmatprep.subr.mxu0 0.0
    %602 = vmatpush1.xpose.msra.mxu0 0.0
    %603 = vmatprep.subr.mxu0 0.0
    %604 = vmatpush1.xpose.msra.mxu0 0.0
    %605 = vmatprep.subr.mxu0 0.0
    %606 = vmatpush1.xpose.msra.mxu0 0.0
    %607 = vmatprep.subr.mxu0 0.0
    %608 = vmatpush1.xpose.msra.mxu0 0.0
    %609 = vmatprep.subr.mxu0 0.0
    %610 = vmatpush1.xpose.msra.mxu0 0.0
    %611 = vmatprep.subr.mxu0 0.0
    %612 = vmatpush1.xpose.msra.mxu0 0.0
    %613 = vmatprep.subr.mxu0 0.0
    %614 = vmatpush1.xpose.msra.mxu0 0.0
    %615 = vmatprep.subr.mxu0 0.0
    %616 = vmatpush1.xpose.msra.mxu0 0.0
    %617 = vmatprep.subr.mxu0 0.0
    %618 = vmatpush1.xpose.msra.mxu0 0.0
    %619 = vmatprep.subr.mxu0 0.0
    %620 = vmatpush1.xpose.msra.mxu0 %v587
    %621 = vmatprep.subr.mxu0 0.0
    %622 = vmatpush2.xpose.msra.mxu0 0.0
    %623 = vmatprep.subr.mxu0 0.0
    %624 = vmatpush2.xpose.msra.mxu0 0.0
    %625 = vmatprep.subr.mxu0 0.0
    %626 = vmatpush2.xpose.msra.mxu0 0.0
    %627 = vmatprep.subr.mxu0 0.0
    %628 = vmatpush2.xpose.msra.mxu0 0.0
    %629 = vmatprep.subr.mxu0 0.0
    %630 = vmatpush2.xpose.msra.mxu0 0.0
    %631 = vmatprep.subr.mxu0 0.0
    %632 = vmatpush2.xpose.msra.mxu0 0.0
    %633 = vmatprep.subr.mxu0 0.0
    %634 = vmatpush2.xpose.msra.mxu0 0.0
    %635 = vmatprep.subr.mxu0 0.0
    %636 = vmatpush2.xpose.msra.mxu0 0.0
    %637 = vmatprep.subr.mxu0 0.0
    %638 = vmatpush2.xpose.msra.mxu0 0.0
    %639 = vmatprep.subr.mxu0 0.0
    %640 = vmatpush2.xpose.msra.mxu0 0.0
    %641 = vmatprep.subr.mxu0 0.0
    %642 = vmatpush2.xpose.msra.mxu0 0.0
    %643 = vmatprep.subr.mxu0 0.0
    %644 = vmatpush2.xpose.msra.mxu0 0.0
    %645 = vmatprep.subr.mxu0 0.0
    %646 = vmatpush2.xpose.msra.mxu0 0.0
    %647 = vmatprep.subr.mxu0 0.0
    %648 = vmatpush2.xpose.msra.mxu0 0.0
    %649 = vmatprep.subr.mxu0 0.0
    %650 = vmatpush2.xpose.msra.mxu0 0.0
    %651 = vmatprep.subr.mxu0 0.0
    %652 = vmatpush2.xpose.msra.mxu0 0.0
    %653 = vmatprep.mubr.f32.mxu0 0.0
    %654 = vmatmul.mubr.f32.gmra.mxu0 %v584
    %v655 = vpop.f32.mrf.mxu0
    %v656 = vadd.f32 0.0, %v655
    %v657 = vpop.f32.mrf.mxu0
    %658 = vdwg.mxu0
    %v660 = vsel %vm126, %v125, 0
    %v663 = vsel %vm126, %v93, 0
    %665 = vmatprep.subr.mxu0 0.0
    %666 = vmatpush1.xpose.msra.mxu0 0.0
    %667 = vmatprep.subr.mxu0 0.0
    %668 = vmatpush1.xpose.msra.mxu0 0.0
    %669 = vmatprep.subr.mxu0 0.0
    %670 = vmatpush1.xpose.msra.mxu0 0.0
    %671 = vmatprep.subr.mxu0 0.0
    %672 = vmatpush1.xpose.msra.mxu0 0.0
    %673 = vmatprep.subr.mxu0 0.0
    %674 = vmatpush1.xpose.msra.mxu0 0.0
    %675 = vmatprep.subr.mxu0 0.0
    %676 = vmatpush1.xpose.msra.mxu0 0.0
    %677 = vmatprep.subr.mxu0 0.0
    %678 = vmatpush1.xpose.msra.mxu0 0.0
    %679 = vmatprep.subr.mxu0 0.0
    %680 = vmatpush1.xpose.msra.mxu0 0.0
    %681 = vmatprep.subr.mxu0 0.0
    %682 = vmatpush1.xpose.msra.mxu0 0.0
    %683 = vmatprep.subr.mxu0 0.0
    %684 = vmatpush1.xpose.msra.mxu0 0.0
    %685 = vmatprep.subr.mxu0 0.0
    %686 = vmatpush1.xpose.msra.mxu0 0.0
    %687 = vmatprep.subr.mxu0 0.0
    %688 = vmatpush1.xpose.msra.mxu0 0.0
    %689 = vmatprep.subr.mxu0 0.0
    %690 = vmatpush1.xpose.msra.mxu0 0.0
    %691 = vmatprep.subr.mxu0 0.0
    %692 = vmatpush1.xpose.msra.mxu0 0.0
    %693 = vmatprep.subr.mxu0 0.0
    %694 = vmatpush1.xpose.msra.mxu0 0.0
    %695 = vmatprep.subr.mxu0 0.0
    %696 = vmatpush1.xpose.msra.mxu0 %v663
    %697 = vmatprep.subr.mxu0 0.0
    %698 = vmatpush2.xpose.msra.mxu0 0.0
    %699 = vmatprep.subr.mxu0 0.0
    %700 = vmatpush2.xpose.msra.mxu0 0.0
    %701 = vmatprep.subr.mxu0 0.0
    %702 = vmatpush2.xpose.msra.mxu0 0.0
    %703 = vmatprep.subr.mxu0 0.0
    %704 = vmatpush2.xpose.msra.mxu0 0.0
    %705 = vmatprep.subr.mxu0 0.0
    %706 = vmatpush2.xpose.msra.mxu0 0.0
    %707 = vmatprep.subr.mxu0 0.0
    %708 = vmatpush2.xpose.msra.mxu0 0.0
    %709 = vmatprep.subr.mxu0 0.0
    %710 = vmatpush2.xpose.msra.mxu0 0.0
    %711 = vmatprep.subr.mxu0 0.0
    %712 = vmatpush2.xpose.msra.mxu0 0.0
    %713 = vmatprep.subr.mxu0 0.0
    %714 = vmatpush2.xpose.msra.mxu0 0.0
    %715 = vmatprep.subr.mxu0 0.0
    %716 = vmatpush2.xpose.msra.mxu0 0.0
    %717 = vmatprep.subr.mxu0 0.0
    %718 = vmatpush2.xpose.msra.mxu0 0.0
    %719 = vmatprep.subr.mxu0 0.0
    %720 = vmatpush2.xpose.msra.mxu0 0.0
    %721 = vmatprep.subr.mxu0 0.0
    %722 = vmatpush2.xpose.msra.mxu0 0.0
    %723 = vmatprep.subr.mxu0 0.0
    %724 = vmatpush2.xpose.msra.mxu0 0.0
    %725 = vmatprep.subr.mxu0 0.0
    %726 = vmatpush2.xpose.msra.mxu0 0.0
    %727 = vmatprep.subr.mxu0 0.0
    %728 = vmatpush2.xpose.msra.mxu0 0.0
    %729 = vmatprep.mubr.f32.mxu0 0.0
    %730 = vmatmul.mubr.f32.gmra.mxu0 %v660
    %v731 = vpop.f32.mrf.mxu0
    %v732 = vadd.f32 0.0, %v731
    %v733 = vpop.f32.mrf.mxu0
    %734 = vdwg.mxu0
    %v735 = vsel %vm110, 16843009, 0
    %v736 = vsel %vm111, 16843009, 0
    %v737 = vsel %vm112, 16843009, 0
    %v738 = vsel %vm113, 16843009, 0
    %v739 = vsel %vm114, 16843009, 0
    %v740 = vsel %vm115, 16843009, 0
    %v741 = vsel %vm116, 16843009, 0
    %v742 = vsel %vm117, 16843009, 0
    %v743 = vunpack.c.0.s8 %v735
    %v744 = vunpack.c.0.s8 %v736
    %v745 = vunpack.c.0.s8 %v737
    %v746 = vunpack.c.0.s8 %v738
    %v747 = vunpack.c.0.s8 %v739
    %v748 = vunpack.c.0.s8 %v740
    %v749 = vunpack.c.0.s8 %v741
    %v750 = vunpack.c.0.s8 %v742
    %vm751 = vcmp.ne.s32.totalorder %v743, 0
    %vm752 = vcmp.ne.s32.totalorder %v744, 0
    %vm753 = vcmp.ne.s32.totalorder %v745, 0
    %vm754 = vcmp.ne.s32.totalorder %v746, 0
    %vm755 = vcmp.ne.s32.totalorder %v747, 0
    %vm756 = vcmp.ne.s32.totalorder %v748, 0
    %vm757 = vcmp.ne.s32.totalorder %v749, 0
    %vm758 = vcmp.ne.s32.totalorder %v750, 0
    %v759 = vsel %vm751, %v200, -1e+09
    %v760 = vsel %vm752, %v276, -1e+09
    %v761 = vsel %vm753, %v352, -1e+09
    %v762 = vsel %vm754, %v428, -1e+09
    %v763 = vsel %vm755, %v504, -1e+09
    %v764 = vsel %vm756, %v580, -1e+09
    %v765 = vsel %vm757, %v656, -1e+09
    %v766 = vsel %vm758, %v732, -1e+09
    %vm767 = vcmask 64512
    %v768 = vsel %vm767, %v759, -inf
    %769 = vmax.xlane.f32.xlu0 %v768
    %v770 = vpop.xlane.xlu0 %769
    %v771 = vsel %vm767, %v760, -inf
    %772 = vmax.xlane.f32.xlu0 %v771
    %v773 = vpop.xlane.xlu0 %772
    %v774 = vsel %vm767, %v761, -inf
    %775 = vmax.xlane.f32.xlu0 %v774
    %v776 = vpop.xlane.xlu0 %775
    %v777 = vsel %vm767, %v762, -inf
    %778 = vmax.xlane.f32.xlu0 %v777
    %v779 = vpop.xlane.xlu0 %778
    %v780 = vsel %vm767, %v763, -inf
    %781 = vmax.xlane.f32.xlu0 %v780
    %v782 = vpop.xlane.xlu0 %781
    %v783 = vsel %vm767, %v764, -inf
    %784 = vmax.xlane.f32.xlu0 %v783
    %v785 = vpop.xlane.xlu0 %784
    %v786 = vsel %vm767, %v765, -inf
    %787 = vmax.xlane.f32.xlu0 %v786
    %v788 = vpop.xlane.xlu0 %787
    %v789 = vsel %vm767, %v766, -inf
    %790 = vmax.xlane.f32.xlu0 %v789
    %v791 = vpop.xlane.xlu0 %790
    %v792 = vsub.f32 %v759, %v770
    %v793 = vsub.f32 %v760, %v773
    %v794 = vsub.f32 %v761, %v776
    %v795 = vsub.f32 %v762, %v779
    %v796 = vsub.f32 %v763, %v782
    %v797 = vsub.f32 %v764, %v785
    %v798 = vsub.f32 %v765, %v788
    %v799 = vsub.f32 %v766, %v791
    %v800 = vmul.f32 %v792, 1.442695
    %v801 = vpow.pop %v800
    %v802 = vmul.f32 %v793, 1.442695
    %v803 = vpow.pop %v802
    %v804 = vmul.f32 %v794, 1.442695
    %v805 = vpow.pop %v804
    %v806 = vmul.f32 %v795, 1.442695
    %v807 = vpow.pop %v806
    %v808 = vmul.f32 %v796, 1.442695
    %v809 = vpow.pop %v808
    %v810 = vmul.f32 %v797, 1.442695
    %v811 = vpow.pop %v810
    %v812 = vmul.f32 %v798, 1.442695
    %v813 = vpow.pop %v812
    %v814 = vmul.f32 %v799, 1.442695
    %v815 = vpow.pop %v814
    %v816 = vsel %vm767, %v801, 0.0
    %817 = vadd.xlane.f32.xlu0 %v816
    %v818 = vpop.xlane.xlu0 %817
    %v819 = vsel %vm767, %v803, 0.0
    %820 = vadd.xlane.f32.xlu0 %v819
    %v821 = vpop.xlane.xlu0 %820
    %v822 = vsel %vm767, %v805, 0.0
    %823 = vadd.xlane.f32.xlu0 %v822
    %v824 = vpop.xlane.xlu0 %823
    %v825 = vsel %vm767, %v807, 0.0
    %826 = vadd.xlane.f32.xlu0 %v825
    %v827 = vpop.xlane.xlu0 %826
    %v828 = vsel %vm767, %v809, 0.0
    %829 = vadd.xlane.f32.xlu0 %v828
    %v830 = vpop.xlane.xlu0 %829
    %v831 = vsel %vm767, %v811, 0.0
    %832 = vadd.xlane.f32.xlu0 %v831
    %v833 = vpop.xlane.xlu0 %832
    %v834 = vsel %vm767, %v813, 0.0
    %835 = vadd.xlane.f32.xlu0 %v834
    %v836 = vpop.xlane.xlu0 %835
    %v837 = vsel %vm767, %v815, 0.0
    %838 = vadd.xlane.f32.xlu0 %v837
    %v839 = vpop.xlane.xlu0 %838
    %v840 = vrcp.pop %v818
    %v841 = vrcp.pop %v821
    %v842 = vrcp.pop %v824
    %v843 = vrcp.pop %v827
    %v844 = vrcp.pop %v830
    %v845 = vrcp.pop %v833
    %v846 = vrcp.pop %v836
    %v847 = vrcp.pop %v839
    %v848 = vmul.f32 %v801, %v840
    %v849 = vmul.f32 %v803, %v841
    %v850 = vmul.f32 %v805, %v842
    %v851 = vmul.f32 %v807, %v843
    %v852 = vmul.f32 %v809, %v844
    %v853 = vmul.f32 %v811, %v845
    %v854 = vmul.f32 %v813, %v846
    %v855 = vmul.f32 %v815, %v847
    %856 = vst.msk [vmem:[#allocation10] sm:$0xff] %vm767, %v848
    %857 = vst.msk [vmem:[#allocation10 + $0x8] sm:$0xff] %vm767, %v849
    %858 = vst.msk [vmem:[#allocation10 + $0x10] sm:$0xff] %vm767, %v850
    %859 = vst.msk [vmem:[#allocation10 + $0x18] sm:$0xff] %vm767, %v851
    %860 = vst.msk [vmem:[#allocation10 + $0x20] sm:$0xff] %vm767, %v852
    %861 = vst.msk [vmem:[#allocation10 + $0x28] sm:$0xff] %vm767, %v853
    %862 = vst.msk [vmem:[#allocation10 + $0x30] sm:$0xff] %vm767, %v854
    %863 = vst.msk [vmem:[#allocation10 + $0x38] sm:$0xff] %vm767, %v855
    %v865 = vsel %vm767, %v848, 0
    %867 = vmatprep.subr.mxu0 0.0
    %868 = vmatpush1.msra.mxu0 0.0
    %869 = vmatprep.subr.mxu0 0.0
    %870 = vmatpush1.msra.mxu0 0.0
    %871 = vmatprep.subr.mxu0 0.0
    %872 = vmatpush1.msra.mxu0 0.0
    %873 = vmatprep.subr.mxu0 0.0
    %874 = vmatpush1.msra.mxu0 0.0
    %875 = vmatprep.subr.mxu0 0.0
    %876 = vmatpush1.msra.mxu0 0.0
    %877 = vmatprep.subr.mxu0 0.0
    %878 = vmatpush1.msra.mxu0 0.0
    %879 = vmatprep.subr.mxu0 0.0
    %880 = vmatpush1.msra.mxu0 0.0
    %881 = vmatprep.subr.mxu0 0.0
    %882 = vmatpush1.msra.mxu0 0.0
    %883 = vmatprep.subr.mxu0 0.0
    %884 = vmatpush1.msra.mxu0 0.0
    %885 = vmatprep.subr.mxu0 0.0
    %886 = vmatpush1.msra.mxu0 0.0
    %887 = vmatprep.subr.mxu0 0.0
    %888 = vmatpush1.msra.mxu0 0.0
    %889 = vmatprep.subr.mxu0 0.0
    %890 = vmatpush1.msra.mxu0 0.0
    %891 = vmatprep.subr.mxu0 0.0
    %892 = vmatpush1.msra.mxu0 0.0
    %893 = vmatprep.subr.mxu0 0.0
    %894 = vmatpush1.msra.mxu0 0.0
    %895 = vmatprep.subr.mxu0 0.0
    %896 = vmatpush1.msra.mxu0 0.0
    %897 = vmatprep.subr.mxu0 0.0
    %898 = vmatpush1.msra.mxu0 %v94
    %899 = vmatprep.subr.mxu0 0.0
    %900 = vmatpush2.msra.mxu0 0.0
    %901 = vmatprep.subr.mxu0 0.0
    %902 = vmatpush2.msra.mxu0 0.0
    %903 = vmatprep.subr.mxu0 0.0
    %904 = vmatpush2.msra.mxu0 0.0
    %905 = vmatprep.subr.mxu0 0.0
    %906 = vmatpush2.msra.mxu0 0.0
    %907 = vmatprep.subr.mxu0 0.0
    %908 = vmatpush2.msra.mxu0 0.0
    %909 = vmatprep.subr.mxu0 0.0
    %910 = vmatpush2.msra.mxu0 0.0
    %911 = vmatprep.subr.mxu0 0.0
    %912 = vmatpush2.msra.mxu0 0.0
    %913 = vmatprep.subr.mxu0 0.0
    %914 = vmatpush2.msra.mxu0 0.0
    %915 = vmatprep.subr.mxu0 0.0
    %916 = vmatpush2.msra.mxu0 0.0
    %917 = vmatprep.subr.mxu0 0.0
    %918 = vmatpush2.msra.mxu0 0.0
    %919 = vmatprep.subr.mxu0 0.0
    %920 = vmatpush2.msra.mxu0 0.0
    %921 = vmatprep.subr.mxu0 0.0
    %922 = vmatpush2.msra.mxu0 0.0
    %923 = vmatprep.subr.mxu0 0.0
    %924 = vmatpush2.msra.mxu0 0.0
    %925 = vmatprep.subr.mxu0 0.0
    %926 = vmatpush2.msra.mxu0 0.0
    %927 = vmatprep.subr.mxu0 0.0
    %928 = vmatpush2.msra.mxu0 0.0
    %929 = vmatprep.subr.mxu0 0.0
    %930 = vmatpush2.msra.mxu0 0.0
    %931 = vmatprep.mubr.f32.mxu0 0.0
    %932 = vmatmul.mubr.f32.gmra.mxu0 %v865
    %v933 = vpop.f32.mrf.mxu0
    %v934 = vadd.f32 0.0, %v933
    %v935 = vpop.f32.mrf.mxu0
    %936 = vdwg.mxu0
    %v938 = vsel %vm767, %v849, 0
    %940 = vmatprep.subr.mxu0 0.0
    %941 = vmatpush1.msra.mxu0 0.0
    %942 = vmatprep.subr.mxu0 0.0
    %943 = vmatpush1.msra.mxu0 0.0
    %944 = vmatprep.subr.mxu0 0.0
    %945 = vmatpush1.msra.mxu0 0.0
    %946 = vmatprep.subr.mxu0 0.0
    %947 = vmatpush1.msra.mxu0 0.0
    %948 = vmatprep.subr.mxu0 0.0
    %949 = vmatpush1.msra.mxu0 0.0
    %950 = vmatprep.subr.mxu0 0.0
    %951 = vmatpush1.msra.mxu0 0.0
    %952 = vmatprep.subr.mxu0 0.0
    %953 = vmatpush1.msra.mxu0 0.0
    %954 = vmatprep.subr.mxu0 0.0
    %955 = vmatpush1.msra.mxu0 0.0
    %956 = vmatprep.subr.mxu0 0.0
    %957 = vmatpush1.msra.mxu0 0.0
    %958 = vmatprep.subr.mxu0 0.0
    %959 = vmatpush1.msra.mxu0 0.0
    %960 = vmatprep.subr.mxu0 0.0
    %961 = vmatpush1.msra.mxu0 0.0
    %962 = vmatprep.subr.mxu0 0.0
    %963 = vmatpush1.msra.mxu0 0.0
    %964 = vmatprep.subr.mxu0 0.0
    %965 = vmatpush1.msra.mxu0 0.0
    %966 = vmatprep.subr.mxu0 0.0
    %967 = vmatpush1.msra.mxu0 0.0
    %968 = vmatprep.subr.mxu0 0.0
    %969 = vmatpush1.msra.mxu0 0.0
    %970 = vmatprep.subr.mxu0 0.0
    %971 = vmatpush1.msra.mxu0 %v95
    %972 = vmatprep.subr.mxu0 0.0
    %973 = vmatpush2.msra.mxu0 0.0
    %974 = vmatprep.subr.mxu0 0.0
    %975 = vmatpush2.msra.mxu0 0.0
    %976 = vmatprep.subr.mxu0 0.0
    %977 = vmatpush2.msra.mxu0 0.0
    %978 = vmatprep.subr.mxu0 0.0
    %979 = vmatpush2.msra.mxu0 0.0
    %980 = vmatprep.subr.mxu0 0.0
    %981 = vmatpush2.msra.mxu0 0.0
    %982 = vmatprep.subr.mxu0 0.0
    %983 = vmatpush2.msra.mxu0 0.0
    %984 = vmatprep.subr.mxu0 0.0
    %985 = vmatpush2.msra.mxu0 0.0
    %986 = vmatprep.subr.mxu0 0.0
    %987 = vmatpush2.msra.mxu0 0.0
    %988 = vmatprep.subr.mxu0 0.0
    %989 = vmatpush2.msra.mxu0 0.0
    %990 = vmatprep.subr.mxu0 0.0
    %991 = vmatpush2.msra.mxu0 0.0
    %992 = vmatprep.subr.mxu0 0.0
    %993 = vmatpush2.msra.mxu0 0.0
    %994 = vmatprep.subr.mxu0 0.0
    %995 = vmatpush2.msra.mxu0 0.0
    %996 = vmatprep.subr.mxu0 0.0
    %997 = vmatpush2.msra.mxu0 0.0
    %998 = vmatprep.subr.mxu0 0.0
    %999 = vmatpush2.msra.mxu0 0.0
    %1000 = vmatprep.subr.mxu0 0.0
    %1001 = vmatpush2.msra.mxu0 0.0
    %1002 = vmatprep.subr.mxu0 0.0
    %1003 = vmatpush2.msra.mxu0 0.0
    %1004 = vmatprep.mubr.f32.mxu0 0.0
    %1005 = vmatmul.mubr.f32.gmra.mxu0 %v938
    %v1006 = vpop.f32.mrf.mxu0
    %v1007 = vadd.f32 0.0, %v1006
    %v1008 = vpop.f32.mrf.mxu0
    %1009 = vdwg.mxu0
    %v1011 = vsel %vm767, %v850, 0
    %1013 = vmatprep.subr.mxu0 0.0
    %1014 = vmatpush1.msra.mxu0 0.0
    %1015 = vmatprep.subr.mxu0 0.0
    %1016 = vmatpush1.msra.mxu0 0.0
    %1017 = vmatprep.subr.mxu0 0.0
    %1018 = vmatpush1.msra.mxu0 0.0
    %1019 = vmatprep.subr.mxu0 0.0
    %1020 = vmatpush1.msra.mxu0 0.0
    %1021 = vmatprep.subr.mxu0 0.0
    %1022 = vmatpush1.msra.mxu0 0.0
    %1023 = vmatprep.subr.mxu0 0.0
    %1024 = vmatpush1.msra.mxu0 0.0
    %1025 = vmatprep.subr.mxu0 0.0
    %1026 = vmatpush1.msra.mxu0 0.0
    %1027 = vmatprep.subr.mxu0 0.0
    %1028 = vmatpush1.msra.mxu0 0.0
    %1029 = vmatprep.subr.mxu0 0.0
    %1030 = vmatpush1.msra.mxu0 0.0
    %1031 = vmatprep.subr.mxu0 0.0
    %1032 = vmatpush1.msra.mxu0 0.0
    %1033 = vmatprep.subr.mxu0 0.0
    %1034 = vmatpush1.msra.mxu0 0.0
    %1035 = vmatprep.subr.mxu0 0.0
    %1036 = vmatpush1.msra.mxu0 0.0
    %1037 = vmatprep.subr.mxu0 0.0
    %1038 = vmatpush1.msra.mxu0 0.0
    %1039 = vmatprep.subr.mxu0 0.0
    %1040 = vmatpush1.msra.mxu0 0.0
    %1041 = vmatprep.subr.mxu0 0.0
    %1042 = vmatpush1.msra.mxu0 0.0
    %1043 = vmatprep.subr.mxu0 0.0
    %1044 = vmatpush1.msra.mxu0 %v96
    %1045 = vmatprep.subr.mxu0 0.0
    %1046 = vmatpush2.msra.mxu0 0.0
    %1047 = vmatprep.subr.mxu0 0.0
    %1048 = vmatpush2.msra.mxu0 0.0
    %1049 = vmatprep.subr.mxu0 0.0
    %1050 = vmatpush2.msra.mxu0 0.0
    %1051 = vmatprep.subr.mxu0 0.0
    %1052 = vmatpush2.msra.mxu0 0.0
    %1053 = vmatprep.subr.mxu0 0.0
    %1054 = vmatpush2.msra.mxu0 0.0
    %1055 = vmatprep.subr.mxu0 0.0
    %1056 = vmatpush2.msra.mxu0 0.0
    %1057 = vmatprep.subr.mxu0 0.0
    %1058 = vmatpush2.msra.mxu0 0.0
    %1059 = vmatprep.subr.mxu0 0.0
    %1060 = vmatpush2.msra.mxu0 0.0
    %1061 = vmatprep.subr.mxu0 0.0
    %1062 = vmatpush2.msra.mxu0 0.0
    %1063 = vmatprep.subr.mxu0 0.0
    %1064 = vmatpush2.msra.mxu0 0.0
    %1065 = vmatprep.subr.mxu0 0.0
    %1066 = vmatpush2.msra.mxu0 0.0
    %1067 = vmatprep.subr.mxu0 0.0
    %1068 = vmatpush2.msra.mxu0 0.0
    %1069 = vmatprep.subr.mxu0 0.0
    %1070 = vmatpush2.msra.mxu0 0.0
    %1071 = vmatprep.subr.mxu0 0.0
    %1072 = vmatpush2.msra.mxu0 0.0
    %1073 = vmatprep.subr.mxu0 0.0
    %1074 = vmatpush2.msra.mxu0 0.0
    %1075 = vmatprep.subr.mxu0 0.0
    %1076 = vmatpush2.msra.mxu0 0.0
    %1077 = vmatprep.mubr.f32.mxu0 0.0
    %1078 = vmatmul.mubr.f32.gmra.mxu0 %v1011
    %v1079 = vpop.f32.mrf.mxu0
    %v1080 = vadd.f32 0.0, %v1079
    %v1081 = vpop.f32.mrf.mxu0
    %1082 = vdwg.mxu0
    %v1084 = vsel %vm767, %v851, 0
    %1086 = vmatprep.subr.mxu0 0.0
    %1087 = vmatpush1.msra.mxu0 0.0
    %1088 = vmatprep.subr.mxu0 0.0
    %1089 = vmatpush1.msra.mxu0 0.0
    %1090 = vmatprep.subr.mxu0 0.0
    %1091 = vmatpush1.msra.mxu0 0.0
    %1092 = vmatprep.subr.mxu0 0.0
    %1093 = vmatpush1.msra.mxu0 0.0
    %1094 = vmatprep.subr.mxu0 0.0
    %1095 = vmatpush1.msra.mxu0 0.0
    %1096 = vmatprep.subr.mxu0 0.0
    %1097 = vmatpush1.msra.mxu0 0.0
    %1098 = vmatprep.subr.mxu0 0.0
    %1099 = vmatpush1.msra.mxu0 0.0
    %1100 = vmatprep.subr.mxu0 0.0
    %1101 = vmatpush1.msra.mxu0 0.0
    %1102 = vmatprep.subr.mxu0 0.0
    %1103 = vmatpush1.msra.mxu0 0.0
    %1104 = vmatprep.subr.mxu0 0.0
    %1105 = vmatpush1.msra.mxu0 0.0
    %1106 = vmatprep.subr.mxu0 0.0
    %1107 = vmatpush1.msra.mxu0 0.0
    %1108 = vmatprep.subr.mxu0 0.0
    %1109 = vmatpush1.msra.mxu0 0.0
    %1110 = vmatprep.subr.mxu0 0.0
    %1111 = vmatpush1.msra.mxu0 0.0
    %1112 = vmatprep.subr.mxu0 0.0
    %1113 = vmatpush1.msra.mxu0 0.0
    %1114 = vmatprep.subr.mxu0 0.0
    %1115 = vmatpush1.msra.mxu0 0.0
    %1116 = vmatprep.subr.mxu0 0.0
    %1117 = vmatpush1.msra.mxu0 %v97
    %1118 = vmatprep.subr.mxu0 0.0
    %1119 = vmatpush2.msra.mxu0 0.0
    %1120 = vmatprep.subr.mxu0 0.0
    %1121 = vmatpush2.msra.mxu0 0.0
    %1122 = vmatprep.subr.mxu0 0.0
    %1123 = vmatpush2.msra.mxu0 0.0
    %1124 = vmatprep.subr.mxu0 0.0
    %1125 = vmatpush2.msra.mxu0 0.0
    %1126 = vmatprep.subr.mxu0 0.0
    %1127 = vmatpush2.msra.mxu0 0.0
    %1128 = vmatprep.subr.mxu0 0.0
    %1129 = vmatpush2.msra.mxu0 0.0
    %1130 = vmatprep.subr.mxu0 0.0
    %1131 = vmatpush2.msra.mxu0 0.0
    %1132 = vmatprep.subr.mxu0 0.0
    %1133 = vmatpush2.msra.mxu0 0.0
    %1134 = vmatprep.subr.mxu0 0.0
    %1135 = vmatpush2.msra.mxu0 0.0
    %1136 = vmatprep.subr.mxu0 0.0
    %1137 = vmatpush2.msra.mxu0 0.0
    %1138 = vmatprep.subr.mxu0 0.0
    %1139 = vmatpush2.msra.mxu0 0.0
    %1140 = vmatprep.subr.mxu0 0.0
    %1141 = vmatpush2.msra.mxu0 0.0
    %1142 = vmatprep.subr.mxu0 0.0
    %1143 = vmatpush2.msra.mxu0 0.0
    %1144 = vmatprep.subr.mxu0 0.0
    %1145 = vmatpush2.msra.mxu0 0.0
    %1146 = vmatprep.subr.mxu0 0.0
    %1147 = vmatpush2.msra.mxu0 0.0
    %1148 = vmatprep.subr.mxu0 0.0
    %1149 = vmatpush2.msra.mxu0 0.0
    %1150 = vmatprep.mubr.f32.mxu0 0.0
    %1151 = vmatmul.mubr.f32.gmra.mxu0 %v1084
    %v1152 = vpop.f32.mrf.mxu0
    %v1153 = vadd.f32 0.0, %v1152
    %v1154 = vpop.f32.mrf.mxu0
    %1155 = vdwg.mxu0
    %v1157 = vsel %vm767, %v852, 0
    %1159 = vmatprep.subr.mxu0 0.0
    %1160 = vmatpush1.msra.mxu0 0.0
    %1161 = vmatprep.subr.mxu0 0.0
    %1162 = vmatpush1.msra.mxu0 0.0
    %1163 = vmatprep.subr.mxu0 0.0
    %1164 = vmatpush1.msra.mxu0 0.0
    %1165 = vmatprep.subr.mxu0 0.0
    %1166 = vmatpush1.msra.mxu0 0.0
    %1167 = vmatprep.subr.mxu0 0.0
    %1168 = vmatpush1.msra.mxu0 0.0
    %1169 = vmatprep.subr.mxu0 0.0
    %1170 = vmatpush1.msra.mxu0 0.0
    %1171 = vmatprep.subr.mxu0 0.0
    %1172 = vmatpush1.msra.mxu0 0.0
    %1173 = vmatprep.subr.mxu0 0.0
    %1174 = vmatpush1.msra.mxu0 0.0
    %1175 = vmatprep.subr.mxu0 0.0
    %1176 = vmatpush1.msra.mxu0 0.0
    %1177 = vmatprep.subr.mxu0 0.0
    %1178 = vmatpush1.msra.mxu0 0.0
    %1179 = vmatprep.subr.mxu0 0.0
    %1180 = vmatpush1.msra.mxu0 0.0
    %1181 = vmatprep.subr.mxu0 0.0
    %1182 = vmatpush1.msra.mxu0 0.0
    %1183 = vmatprep.subr.mxu0 0.0
    %1184 = vmatpush1.msra.mxu0 0.0
    %1185 = vmatprep.subr.mxu0 0.0
    %1186 = vmatpush1.msra.mxu0 0.0
    %1187 = vmatprep.subr.mxu0 0.0
    %1188 = vmatpush1.msra.mxu0 0.0
    %1189 = vmatprep.subr.mxu0 0.0
    %1190 = vmatpush1.msra.mxu0 %v98
    %1191 = vmatprep.subr.mxu0 0.0
    %1192 = vmatpush2.msra.mxu0 0.0
    %1193 = vmatprep.subr.mxu0 0.0
    %1194 = vmatpush2.msra.mxu0 0.0
    %1195 = vmatprep.subr.mxu0 0.0
    %1196 = vmatpush2.msra.mxu0 0.0
    %1197 = vmatprep.subr.mxu0 0.0
    %1198 = vmatpush2.msra.mxu0 0.0
    %1199 = vmatprep.subr.mxu0 0.0
    %1200 = vmatpush2.msra.mxu0 0.0
    %1201 = vmatprep.subr.mxu0 0.0
    %1202 = vmatpush2.msra.mxu0 0.0
    %1203 = vmatprep.subr.mxu0 0.0
    %1204 = vmatpush2.msra.mxu0 0.0
    %1205 = vmatprep.subr.mxu0 0.0
    %1206 = vmatpush2.msra.mxu0 0.0
    %1207 = vmatprep.subr.mxu0 0.0
    %1208 = vmatpush2.msra.mxu0 0.0
    %1209 = vmatprep.subr.mxu0 0.0
    %1210 = vmatpush2.msra.mxu0 0.0
    %1211 = vmatprep.subr.mxu0 0.0
    %1212 = vmatpush2.msra.mxu0 0.0
    %1213 = vmatprep.subr.mxu0 0.0
    %1214 = vmatpush2.msra.mxu0 0.0
    %1215 = vmatprep.subr.mxu0 0.0
    %1216 = vmatpush2.msra.mxu0 0.0
    %1217 = vmatprep.subr.mxu0 0.0
    %1218 = vmatpush2.msra.mxu0 0.0
    %1219 = vmatprep.subr.mxu0 0.0
    %1220 = vmatpush2.msra.mxu0 0.0
    %1221 = vmatprep.subr.mxu0 0.0
    %1222 = vmatpush2.msra.mxu0 0.0
    %1223 = vmatprep.mubr.f32.mxu0 0.0
    %1224 = vmatmul.mubr.f32.gmra.mxu0 %v1157
    %v1225 = vpop.f32.mrf.mxu0
    %v1226 = vadd.f32 0.0, %v1225
    %v1227 = vpop.f32.mrf.mxu0
    %1228 = vdwg.mxu0
    %v1230 = vsel %vm767, %v853, 0
    %1232 = vmatprep.subr.mxu0 0.0
    %1233 = vmatpush1.msra.mxu0 0.0
    %1234 = vmatprep.subr.mxu0 0.0
    %1235 = vmatpush1.msra.mxu0 0.0
    %1236 = vmatprep.subr.mxu0 0.0
    %1237 = vmatpush1.msra.mxu0 0.0
    %1238 = vmatprep.subr.mxu0 0.0
    %1239 = vmatpush1.msra.mxu0 0.0
    %1240 = vmatprep.subr.mxu0 0.0
    %1241 = vmatpush1.msra.mxu0 0.0
    %1242 = vmatprep.subr.mxu0 0.0
    %1243 = vmatpush1.msra.mxu0 0.0
    %1244 = vmatprep.subr.mxu0 0.0
    %1245 = vmatpush1.msra.mxu0 0.0
    %1246 = vmatprep.subr.mxu0 0.0
    %1247 = vmatpush1.msra.mxu0 0.0
    %1248 = vmatprep.subr.mxu0 0.0
    %1249 = vmatpush1.msra.mxu0 0.0
    %1250 = vmatprep.subr.mxu0 0.0
    %1251 = vmatpush1.msra.mxu0 0.0
    %1252 = vmatprep.subr.mxu0 0.0
    %1253 = vmatpush1.msra.mxu0 0.0
    %1254 = vmatprep.subr.mxu0 0.0
    %1255 = vmatpush1.msra.mxu0 0.0
    %1256 = vmatprep.subr.mxu0 0.0
    %1257 = vmatpush1.msra.mxu0 0.0
    %1258 = vmatprep.subr.mxu0 0.0
    %1259 = vmatpush1.msra.mxu0 0.0
    %1260 = vmatprep.subr.mxu0 0.0
    %1261 = vmatpush1.msra.mxu0 0.0
    %1262 = vmatprep.subr.mxu0 0.0
    %1263 = vmatpush1.msra.mxu0 %v99
    %1264 = vmatprep.subr.mxu0 0.0
    %1265 = vmatpush2.msra.mxu0 0.0
    %1266 = vmatprep.subr.mxu0 0.0
    %1267 = vmatpush2.msra.mxu0 0.0
    %1268 = vmatprep.subr.mxu0 0.0
    %1269 = vmatpush2.msra.mxu0 0.0
    %1270 = vmatprep.subr.mxu0 0.0
    %1271 = vmatpush2.msra.mxu0 0.0
    %1272 = vmatprep.subr.mxu0 0.0
    %1273 = vmatpush2.msra.mxu0 0.0
    %1274 = vmatprep.subr.mxu0 0.0
    %1275 = vmatpush2.msra.mxu0 0.0
    %1276 = vmatprep.subr.mxu0 0.0
    %1277 = vmatpush2.msra.mxu0 0.0
    %1278 = vmatprep.subr.mxu0 0.0
    %1279 = vmatpush2.msra.mxu0 0.0
    %1280 = vmatprep.subr.mxu0 0.0
    %1281 = vmatpush2.msra.mxu0 0.0
    %1282 = vmatprep.subr.mxu0 0.0
    %1283 = vmatpush2.msra.mxu0 0.0
    %1284 = vmatprep.subr.mxu0 0.0
    %1285 = vmatpush2.msra.mxu0 0.0
    %1286 = vmatprep.subr.mxu0 0.0
    %1287 = vmatpush2.msra.mxu0 0.0
    %1288 = vmatprep.subr.mxu0 0.0
    %1289 = vmatpush2.msra.mxu0 0.0
    %1290 = vmatprep.subr.mxu0 0.0
    %1291 = vmatpush2.msra.mxu0 0.0
    %1292 = vmatprep.subr.mxu0 0.0
    %1293 = vmatpush2.msra.mxu0 0.0
    %1294 = vmatprep.subr.mxu0 0.0
    %1295 = vmatpush2.msra.mxu0 0.0
    %1296 = vmatprep.mubr.f32.mxu0 0.0
    %1297 = vmatmul.mubr.f32.gmra.mxu0 %v1230
    %v1298 = vpop.f32.mrf.mxu0
    %v1299 = vadd.f32 0.0, %v1298
    %v1300 = vpop.f32.mrf.mxu0
    %1301 = vdwg.mxu0
    %v1303 = vsel %vm767, %v854, 0
    %1305 = vmatprep.subr.mxu0 0.0
    %1306 = vmatpush1.msra.mxu0 0.0
    %1307 = vmatprep.subr.mxu0 0.0
    %1308 = vmatpush1.msra.mxu0 0.0
    %1309 = vmatprep.subr.mxu0 0.0
    %1310 = vmatpush1.msra.mxu0 0.0
    %1311 = vmatprep.subr.mxu0 0.0
    %1312 = vmatpush1.msra.mxu0 0.0
    %1313 = vmatprep.subr.mxu0 0.0
    %1314 = vmatpush1.msra.mxu0 0.0
    %1315 = vmatprep.subr.mxu0 0.0
    %1316 = vmatpush1.msra.mxu0 0.0
    %1317 = vmatprep.subr.mxu0 0.0
    %1318 = vmatpush1.msra.mxu0 0.0
    %1319 = vmatprep.subr.mxu0 0.0
    %1320 = vmatpush1.msra.mxu0 0.0
    %1321 = vmatprep.subr.mxu0 0.0
    %1322 = vmatpush1.msra.mxu0 0.0
    %1323 = vmatprep.subr.mxu0 0.0
    %1324 = vmatpush1.msra.mxu0 0.0
    %1325 = vmatprep.subr.mxu0 0.0
    %1326 = vmatpush1.msra.mxu0 0.0
    %1327 = vmatprep.subr.mxu0 0.0
    %1328 = vmatpush1.msra.mxu0 0.0
    %1329 = vmatprep.subr.mxu0 0.0
    %1330 = vmatpush1.msra.mxu0 0.0
    %1331 = vmatprep.subr.mxu0 0.0
    %1332 = vmatpush1.msra.mxu0 0.0
    %1333 = vmatprep.subr.mxu0 0.0
    %1334 = vmatpush1.msra.mxu0 0.0
    %1335 = vmatprep.subr.mxu0 0.0
    %1336 = vmatpush1.msra.mxu0 %v100
    %1337 = vmatprep.subr.mxu0 0.0
    %1338 = vmatpush2.msra.mxu0 0.0
    %1339 = vmatprep.subr.mxu0 0.0
    %1340 = vmatpush2.msra.mxu0 0.0
    %1341 = vmatprep.subr.mxu0 0.0
    %1342 = vmatpush2.msra.mxu0 0.0
    %1343 = vmatprep.subr.mxu0 0.0
    %1344 = vmatpush2.msra.mxu0 0.0
    %1345 = vmatprep.subr.mxu0 0.0
    %1346 = vmatpush2.msra.mxu0 0.0
    %1347 = vmatprep.subr.mxu0 0.0
    %1348 = vmatpush2.msra.mxu0 0.0
    %1349 = vmatprep.subr.mxu0 0.0
    %1350 = vmatpush2.msra.mxu0 0.0
    %1351 = vmatprep.subr.mxu0 0.0
    %1352 = vmatpush2.msra.mxu0 0.0
    %1353 = vmatprep.subr.mxu0 0.0
    %1354 = vmatpush2.msra.mxu0 0.0
    %1355 = vmatprep.subr.mxu0 0.0
    %1356 = vmatpush2.msra.mxu0 0.0
    %1357 = vmatprep.subr.mxu0 0.0
    %1358 = vmatpush2.msra.mxu0 0.0
    %1359 = vmatprep.subr.mxu0 0.0
    %1360 = vmatpush2.msra.mxu0 0.0
    %1361 = vmatprep.subr.mxu0 0.0
    %1362 = vmatpush2.msra.mxu0 0.0
    %1363 = vmatprep.subr.mxu0 0.0
    %1364 = vmatpush2.msra.mxu0 0.0
    %1365 = vmatprep.subr.mxu0 0.0
    %1366 = vmatpush2.msra.mxu0 0.0
    %1367 = vmatprep.subr.mxu0 0.0
    %1368 = vmatpush2.msra.mxu0 0.0
    %1369 = vmatprep.mubr.f32.mxu0 0.0
    %1370 = vmatmul.mubr.f32.gmra.mxu0 %v1303
    %v1371 = vpop.f32.mrf.mxu0
    %v1372 = vadd.f32 0.0, %v1371
    %v1373 = vpop.f32.mrf.mxu0
    %1374 = vdwg.mxu0
    %v1376 = vsel %vm767, %v855, 0
    %1378 = vmatprep.subr.mxu0 0.0
    %1379 = vmatpush1.msra.mxu0 0.0
    %1380 = vmatprep.subr.mxu0 0.0
    %1381 = vmatpush1.msra.mxu0 0.0
    %1382 = vmatprep.subr.mxu0 0.0
    %1383 = vmatpush1.msra.mxu0 0.0
    %1384 = vmatprep.subr.mxu0 0.0
    %1385 = vmatpush1.msra.mxu0 0.0
    %1386 = vmatprep.subr.mxu0 0.0
    %1387 = vmatpush1.msra.mxu0 0.0
    %1388 = vmatprep.subr.mxu0 0.0
    %1389 = vmatpush1.msra.mxu0 0.0
    %1390 = vmatprep.subr.mxu0 0.0
    %1391 = vmatpush1.msra.mxu0 0.0
    %1392 = vmatprep.subr.mxu0 0.0
    %1393 = vmatpush1.msra.mxu0 0.0
    %1394 = vmatprep.subr.mxu0 0.0
    %1395 = vmatpush1.msra.mxu0 0.0
    %1396 = vmatprep.subr.mxu0 0.0
    %1397 = vmatpush1.msra.mxu0 0.0
    %1398 = vmatprep.subr.mxu0 0.0
    %1399 = vmatpush1.msra.mxu0 0.0
    %1400 = vmatprep.subr.mxu0 0.0
    %1401 = vmatpush1.msra.mxu0 0.0
    %1402 = vmatprep.subr.mxu0 0.0
    %1403 = vmatpush1.msra.mxu0 0.0
    %1404 = vmatprep.subr.mxu0 0.0
    %1405 = vmatpush1.msra.mxu0 0.0
    %1406 = vmatprep.subr.mxu0 0.0
    %1407 = vmatpush1.msra.mxu0 0.0
    %1408 = vmatprep.subr.mxu0 0.0
    %1409 = vmatpush1.msra.mxu0 %v101
    %1410 = vmatprep.subr.mxu0 0.0
    %1411 = vmatpush2.msra.mxu0 0.0
    %1412 = vmatprep.subr.mxu0 0.0
    %1413 = vmatpush2.msra.mxu0 0.0
    %1414 = vmatprep.subr.mxu0 0.0
    %1415 = vmatpush2.msra.mxu0 0.0
    %1416 = vmatprep.subr.mxu0 0.0
    %1417 = vmatpush2.msra.mxu0 0.0
    %1418 = vmatprep.subr.mxu0 0.0
    %1419 = vmatpush2.msra.mxu0 0.0
    %1420 = vmatprep.subr.mxu0 0.0
    %1421 = vmatpush2.msra.mxu0 0.0
    %1422 = vmatprep.subr.mxu0 0.0
    %1423 = vmatpush2.msra.mxu0 0.0
    %1424 = vmatprep.subr.mxu0 0.0
    %1425 = vmatpush2.msra.mxu0 0.0
    %1426 = vmatprep.subr.mxu0 0.0
    %1427 = vmatpush2.msra.mxu0 0.0
    %1428 = vmatprep.subr.mxu0 0.0
    %1429 = vmatpush2.msra.mxu0 0.0
    %1430 = vmatprep.subr.mxu0 0.0
    %1431 = vmatpush2.msra.mxu0 0.0
    %1432 = vmatprep.subr.mxu0 0.0
    %1433 = vmatpush2.msra.mxu0 0.0
    %1434 = vmatprep.subr.mxu0 0.0
    %1435 = vmatpush2.msra.mxu0 0.0
    %1436 = vmatprep.subr.mxu0 0.0
    %1437 = vmatpush2.msra.mxu0 0.0
    %1438 = vmatprep.subr.mxu0 0.0
    %1439 = vmatpush2.msra.mxu0 0.0
    %1440 = vmatprep.subr.mxu0 0.0
    %1441 = vmatpush2.msra.mxu0 0.0
    %1442 = vmatprep.mubr.f32.mxu0 0.0
    %1443 = vmatmul.mubr.f32.gmra.mxu0 %v1376
    %v1444 = vpop.f32.mrf.mxu0
    %v1445 = vadd.f32 0.0, %v1444
    %v1446 = vpop.f32.mrf.mxu0
    %1447 = vdwg.mxu0
    %1448 = vst.msk [vmem:[#allocation11] sm:$0xff] %vm126, %v934
    %1449 = vst.msk [vmem:[#allocation11 + $0x8] sm:$0xff] %vm126, %v1007
    %1450 = vst.msk [vmem:[#allocation11 + $0x10] sm:$0xff] %vm126, %v1080
    %1451 = vst.msk [vmem:[#allocation11 + $0x18] sm:$0xff] %vm126, %v1153
    %1452 = vst.msk [vmem:[#allocation11 + $0x20] sm:$0xff] %vm126, %v1226
    %1453 = vst.msk [vmem:[#allocation11 + $0x28] sm:$0xff] %vm126, %v1299
    %1454 = vst.msk [vmem:[#allocation11 + $0x30] sm:$0xff] %vm126, %v1372
    %1455 = vst.msk [vmem:[#allocation11 + $0x38] sm:$0xff] %vm126, %v1445
    // Predicated region
    $region34: #{tpu_custom_call.1} parent=1 // pred_check
      _
    $region35: #{tpu_custom_call.1} parent=1 // pred_check_branch
      %1457 = sbr.rel (0) target = $region37
    $region36: #{tpu_custom_call.1} parent=1 // pred_region
      %s1459 = ssub.s32 1024, 1024
      %1460 = vsyncadd [#allocation4], %s1459
      %s1461 = sshll.u32 [#allocation10], 4
      %s1462 = int_to_ptr.vmem [resolvable:$true] %s1461
      %1467 = dma.vmem_to_hbm [thread:$0]  %s1462, 1024, %s4, [#allocation4], 128, 128, 8
    $region37: #{tpu_custom_call.1} parent=1 // pred_fallthru
      _
    // Predicated region
    $region38: #{tpu_custom_call.1} parent=1 // pred_check
      _
    $region39: #{tpu_custom_call.1} parent=1 // pred_check_branch
      %1469 = sbr.rel (0) target = $region41
    $region40: #{tpu_custom_call.1} parent=1 // pred_region
      %s1471 = ssub.s32 1024, 1024
      %1472 = vsyncadd [#allocation12], %s1471
      %s1473 = sshll.u32 [#allocation11], 4
      %s1474 = int_to_ptr.vmem [resolvable:$true] %s1473
      %1479 = dma.vmem_to_hbm [thread:$0]  %s1474, 1024, %s5, [#allocation12], 128, 128, 8
    $region41: #{tpu_custom_call.1} parent=1 // pred_fallthru
      _
    // Predicated region
    $region42: #{tpu_custom_call.1} parent=1 // pred_check
      _
    $region43: #{tpu_custom_call.1} parent=1 // pred_check_branch
      %1481 = sbr.rel (0) target = $region45
    $region44: #{tpu_custom_call.1} parent=1 // pred_region
      %1482 = dma.done [#allocation4], 1024
    $region45: #{tpu_custom_call.1} parent=1 // pred_fallthru
      _
    // Predicated region
    $region46: #{tpu_custom_call.1} parent=1 // pred_check
      _
    $region47: #{tpu_custom_call.1} parent=1 // pred_check_branch
      %1484 = sbr.rel (0) target = $region49
    $region48: #{tpu_custom_call.1} parent=1 // pred_region
      %1485 = dma.done [#allocation12], 1024
    $region49: #{tpu_custom_call.1} parent=1 // pred_fallthru
      _
    %1486 = vsyncpa [#allocation3], 1
    %1487 = vsyncpa [#allocation6], 1
    %1488 = vsyncpa [#allocation9], 1
    %1489 = vsyncpa [#allocation4], 1
    %1490 = vsyncpa [#allocation12], 1

</llo_original>
